<compile_context>
chip_gen: v5e
topology: v5e:2x2
jax: 0.10.0
libtpu: 0.0.40
codegen_flags: <defaults>
</compile_context>

<pallas_src>
import jax
import jax.numpy as jnp
from jax.experimental import pallas as pl
from jax.experimental.pallas import tpu as pltpu

HIDDEN = 768
MID = 512
OUT = 512


def _mlp_head_kernel(x_ref, w1_ref, b1_ref, w2_ref, b2_ref, o_ref):
    # x_ref : [bb, 768] bf16 (CLS rows only)    w1_ref: [768, 512] bf16   b1_ref: [1, 512] f32
    # w2_ref: [512, 512] bf16                   b2_ref: [1, 512] f32      o_ref : [bb, 512]
    x = x_ref[...]
    if x.dtype != jnp.bfloat16:          # static (trace-time) check; no-op when fed bf16
        x = x.astype(jnp.bfloat16)
    # fc1[0]: Linear(768, 512)  -- bf16 MXU, f32 accumulate
    h = jnp.dot(x, w1_ref[...], preferred_element_type=jnp.float32) + b1_ref[...]
    # fc1[1]: Dropout(0.25) -> identity in eval mode
    # fc1[2]: ReLU
    h = jnp.maximum(h, 0.0)
    # fc1[3]: Linear(512, 512)
    y = jnp.dot(h.astype(jnp.bfloat16), w2_ref[...],
                preferred_element_type=jnp.float32) + b2_ref[...]
    o_ref[...] = y.astype(o_ref.dtype)


def vqa_text_head(last_hidden_state, w1_bf16, b1, w2_bf16, b2, *,
                  block_b=512, out_dtype=jnp.float32):
    """last_hidden_state: [B, S, 768] -> [B, 512] (CLS-token MLP head)."""
    B, S, H = last_hidden_state.shape
    assert H == HIDDEN, H
    # Free, contiguous view: CLS token == columns [0, 768) of each row.
    hs2d = last_hidden_state.reshape(B, S * H)

    bb = min(block_b, B)                 # bb == B (full dim) when B small, else multiple of 8
    grid_b = pl.cdiv(B, bb)

    in_bytes = jnp.dtype(last_hidden_state.dtype).itemsize
    out_bytes = jnp.dtype(out_dtype).itemsize
    weight_bytes = (HIDDEN * MID + MID * OUT) * 2 + (MID + OUT) * 4   # bf16 weights, f32 biases
    cost = pl.CostEstimate(
        flops=2 * B * (HIDDEN * MID + MID * OUT),
        transcendentals=0,
        bytes_accessed=B * HIDDEN * in_bytes + B * OUT * out_bytes + weight_bytes,
    )

    return pl.pallas_call(
        _mlp_head_kernel,
        out_shape=jax.ShapeDtypeStruct((B, OUT), out_dtype),
        grid_spec=pltpu.PrefetchScalarGridSpec(
            num_scalar_prefetch=0,
            grid=(grid_b,),
            in_specs=[
                # Only the CLS slice of each batch row is DMA'd (block column 0 of [B, S*768]).
                pl.BlockSpec((bb, HIDDEN), lambda b: (b, 0)),
                # Weights/biases: constant block index -> fetched once, VMEM-resident.
                pl.BlockSpec((HIDDEN, MID), lambda b: (0, 0)),
                pl.BlockSpec((1, MID), lambda b: (0, 0)),
                pl.BlockSpec((MID, OUT), lambda b: (0, 0)),
                pl.BlockSpec((1, OUT), lambda b: (0, 0)),
            ],
            out_specs=pl.BlockSpec((bb, OUT), lambda b: (b, 0)),
        ),
        compiler_params=pltpu.CompilerParams(
            dimension_semantics=("parallel",),
        ),
        cost_estimate=cost,
    )(hs2d, w1_bf16, b1, w2_bf16, b2)


def prepare_head_params(params):
    """One-time cast of the fc1 head params to the kernel's storage layout/dtypes."""
    return {
        "w1": params["w1"].astype(jnp.bfloat16),          # [768, 512] bf16
        "b1": params["b1"].reshape(1, MID).astype(jnp.float32),
        "w2": params["w2"].astype(jnp.bfloat16),          # [512, 512] bf16
        "b2": params["b2"].reshape(1, OUT).astype(jnp.float32),
    }


def vqa_text_model_forward(last_hidden_state, head_params, *, block_b=512,
                           out_dtype=jnp.float32):
    """Mirrors VQATextModel.forward given a precomputed BERT last_hidden_state."""
    return vqa_text_head(last_hidden_state,
                         head_params["w1"], head_params["b1"],
                         head_params["w2"], head_params["b2"],
                         block_b=block_b, out_dtype=out_dtype)


def init_params(key):
    """Deterministic init matching nn.Linear shapes (uniform +/- 1/sqrt(fan_in)).

    Weights are stored [in, out] (transpose of PyTorch's [out, in]) so the kernel
    computes x @ W + b directly.
    """
    k1, k2, k3, k4 = jax.random.split(key, 4)
    lim1 = 1.0 / jnp.sqrt(jnp.float32(HIDDEN))
    lim2 = 1.0 / jnp.sqrt(jnp.float32(MID))
    return {
        "w1": jax.random.uniform(k1, (HIDDEN, MID), jnp.float32, -lim1, lim1),
        "b1": jax.random.uniform(k2, (MID,), jnp.float32, -lim1, lim1),
        "w2": jax.random.uniform(k3, (MID, OUT), jnp.float32, -lim2, lim2),
        "b2": jax.random.uniform(k4, (OUT,), jnp.float32, -lim2, lim2),
    }


if __name__ == "__main__":
    key = jax.random.PRNGKey(0)
    kp, kx = jax.random.split(key)

    B, S = 2, 8  # small batch / seq; hidden dim fixed at 768 by the module
    params = init_params(kp)
    head_params = prepare_head_params(params)  # cast weights to bf16 once, outside the kernel

    # Synthetic stand-in for bert(**text).last_hidden_state — kept in bf16, as a TPU BERT
    # would produce it, so the kernel's input stream is half the HBM bytes.
    last_hidden_state = jax.random.normal(kx, (B, S, HIDDEN), jnp.float32).astype(jnp.bfloat16)

    out = vqa_text_model_forward(last_hidden_state, head_params)
    out = jax.block_until_ready(out)

    # Reference in plain JAX with the same bf16 activation/weight storage and f32 accumulation
    # (eval-mode dropout = identity).
    cls = last_hidden_state[:, 0, :].astype(jnp.bfloat16)
    h_ref = jnp.dot(cls, head_params["w1"],
                    preferred_element_type=jnp.float32) + head_params["b1"]
    h_ref = jnp.maximum(h_ref, 0.0)
    ref = jnp.dot(h_ref.astype(jnp.bfloat16), head_params["w2"],
                  preferred_element_type=jnp.float32) + head_params["b2"]

    assert out.shape == (B, OUT), out.shape
    assert jnp.allclose(out, ref.astype(out.dtype), atol=1e-2, rtol=1e-2), "mismatch vs reference"

    print("KERNEL_OK")
</pallas_src>

<mosaic_0001>
module attributes {stable_mosaic.version = 11 : i64} {
  func.func @_mlp_head_kernel(%arg0: i32, %arg1: memref<2x768xbf16, #tpu.memory_space<vmem>>, %arg2: memref<768x512xbf16, #tpu.memory_space<vmem>>, %arg3: memref<1x512xf32, #tpu.memory_space<vmem>>, %arg4: memref<512x512xbf16, #tpu.memory_space<vmem>>, %arg5: memref<1x512xf32, #tpu.memory_space<vmem>>, %arg6: memref<2x512xf32, #tpu.memory_space<vmem>>) attributes {dimension_semantics = [#tpu.dimension_semantics<parallel>], iteration_bounds = array<i64: 1>, scalar_prefetch = 0 : i64, scratch_operands = 0 : i64, tpu.core_type = #tpu.core_type<tc>, window_params = [{transform_indices = @transform_0, window_bounds = array<i64: 2, 768>}, {pipeline_mode = #tpu.pipeline_mode<synchronous>, transform_indices = @transform_1, window_bounds = array<i64: 768, 512>}, {pipeline_mode = #tpu.pipeline_mode<synchronous>, transform_indices = @transform_2, window_bounds = array<i64: 1, 512>}, {pipeline_mode = #tpu.pipeline_mode<synchronous>, transform_indices = @transform_3, window_bounds = array<i64: 512, 512>}, {pipeline_mode = #tpu.pipeline_mode<synchronous>, transform_indices = @transform_4, window_bounds = array<i64: 1, 512>}, {transform_indices = @transform_5, window_bounds = array<i64: 2, 512>}]} {
    %c0 = arith.constant 0 : index
    %c0_0 = arith.constant 0 : index
    %0 = vector.load %arg1[%c0, %c0_0] : memref<2x768xbf16, #tpu.memory_space<vmem>>, vector<2x768xbf16>
    %c0_1 = arith.constant 0 : index
    %c0_2 = arith.constant 0 : index
    %1 = vector.load %arg2[%c0_1, %c0_2] : memref<768x512xbf16, #tpu.memory_space<vmem>>, vector<768x512xbf16>
    %cst = arith.constant dense<0.000000e+00> : vector<2x512xf32>
    %2 = tpu.matmul %0, %1, %cst {dimension_numbers = #tpu.dot_dimension_numbers<[1], [0], [0], [1], [0, 0, 1, 1], [], []>} : vector<2x768xbf16>, vector<768x512xbf16>, vector<2x512xf32> -> vector<2x512xf32>
    %c0_3 = arith.constant 0 : index
    %c0_4 = arith.constant 0 : index
    %3 = vector.load %arg3[%c0_3, %c0_4] : memref<1x512xf32, #tpu.memory_space<vmem>>, vector<1x512xf32>
    %4 = vector.broadcast %3 : vector<1x512xf32> to vector<2x512xf32>
    %5 = arith.addf %2, %4 : vector<2x512xf32>
    %cst_5 = arith.constant 0.000000e+00 : f32
    %6 = vector.broadcast %cst_5 : f32 to vector<2x512xf32>
    %7 = arith.maximumf %5, %6 : vector<2x512xf32>
    %8 = arith.truncf %7 : vector<2x512xf32> to vector<2x512xbf16>
    %c0_6 = arith.constant 0 : index
    %c0_7 = arith.constant 0 : index
    %9 = vector.load %arg4[%c0_6, %c0_7] : memref<512x512xbf16, #tpu.memory_space<vmem>>, vector<512x512xbf16>
    %cst_8 = arith.constant dense<0.000000e+00> : vector<2x512xf32>
    %10 = tpu.matmul %8, %9, %cst_8 {dimension_numbers = #tpu.dot_dimension_numbers<[1], [0], [0], [1], [0, 0, 1, 1], [], []>} : vector<2x512xbf16>, vector<512x512xbf16>, vector<2x512xf32> -> vector<2x512xf32>
    %c0_9 = arith.constant 0 : index
    %c0_10 = arith.constant 0 : index
    %11 = vector.load %arg5[%c0_9, %c0_10] : memref<1x512xf32, #tpu.memory_space<vmem>>, vector<1x512xf32>
    %12 = vector.broadcast %11 : vector<1x512xf32> to vector<2x512xf32>
    %13 = arith.addf %10, %12 : vector<2x512xf32>
    %c0_11 = arith.constant 0 : index
    %c0_12 = arith.constant 0 : index
    %14 = vector.load %arg6[%c0_11, %c0_12] : memref<2x512xf32, #tpu.memory_space<vmem>>, vector<2x512xf32>
    tpu.vector_store %arg6[%c0_11, %c0_12], %13 {strides = array<i32>} : memref<2x512xf32, #tpu.memory_space<vmem>>, vector<2x512xf32>,
    return
  }
  func.func @transform_0(%arg0: i32) -> (i32, i32) {
    %c0_i32 = arith.constant 0 : i32
    %c0_i32_0 = arith.constant 0 : i32
    return %arg0, %c0_i32 : i32, i32
  }
  func.func @transform_1(%arg0: i32) -> (i32, i32) {
    %c0_i32 = arith.constant 0 : i32
    %c0_i32_0 = arith.constant 0 : i32
    %c0_i32_1 = arith.constant 0 : i32
    return %c0_i32, %c0_i32_0 : i32, i32
  }
  func.func @transform_2(%arg0: i32) -> (i32, i32) {
    %c0_i32 = arith.constant 0 : i32
    %c0_i32_0 = arith.constant 0 : i32
    %c0_i32_1 = arith.constant 0 : i32
    return %c0_i32, %c0_i32_0 : i32, i32
  }
  func.func @transform_3(%arg0: i32) -> (i32, i32) {
    %c0_i32 = arith.constant 0 : i32
    %c0_i32_0 = arith.constant 0 : i32
    %c0_i32_1 = arith.constant 0 : i32
    return %c0_i32, %c0_i32_0 : i32, i32
  }
  func.func @transform_4(%arg0: i32) -> (i32, i32) {
    %c0_i32 = arith.constant 0 : i32
    %c0_i32_0 = arith.constant 0 : i32
    %c0_i32_1 = arith.constant 0 : i32
    return %c0_i32, %c0_i32_0 : i32, i32
  }
  func.func @transform_5(%arg0: i32) -> (i32, i32) {
    %c0_i32 = arith.constant 0 : i32
    %c0_i32_0 = arith.constant 0 : i32
    return %arg0, %c0_i32 : i32, i32
  }
}

</mosaic_0001>

<llo_original>
// kernel: tpu_custom_call.1
$region0: #{tpu_custom_call.1}
  #allocation0 [shape = 'u32[]', space=smem, size = 0x4, offset = 0x4, fixed_abs, tag = 'smem constant byte address 0x4 - core index']
  #allocation1 [shape = 'u32[72,128]{1,0:T(1,128)}', space=vmem, size = 0x9000, scoped, tag = 'internal scratch']
  %s0 = inlined_call_operand.hbm [shape: bf16[2,6144], index: 0, kind: input, shape index: {}]
  %s1 = inlined_call_operand.hbm [shape: bf16[768,512], index: 1, kind: input, shape index: {}]
  %s2 = inlined_call_operand.hbm [shape: f32[1,512], index: 2, kind: input, shape index: {}]
  %s3 = inlined_call_operand.hbm [shape: bf16[512,512], index: 3, kind: input, shape index: {}]
  %s4 = inlined_call_operand.hbm [shape: f32[1,512], index: 4, kind: input, shape index: {}]
  %s5 = inlined_call_operand.hbm [shape: f32[2,512], index: 5, kind: output, shape index: {}]
  %s6 = sld [smem:[#allocation0]]
  $region50: #{tpu_custom_call.1} parent=0
    _
  %s8 = ssub.s32 1, %s6
  %s9 = scalar_select 0, %s8, %s6
  $region1: #{tpu_custom_call.1} parent=0
    #allocation2 [shape = 'u8[3072]{0}', space=vmem, size = 0xc00, scoped, tag = 'input window, operand 0, single buffered']
    #allocation3 [shape = 's32[1]{0}', space=sflag, size = 0x4, scoped, tag = 'scoped memory for tpu_custom_call.1']
    #allocation4 [shape = 's32[1]{0}', space=sflag, size = 0x4, scoped, tag = 'scoped memory for tpu_custom_call.1']
    #allocation5 [shape = 'u8[786432]{0}', space=vmem, size = 0xc0000, scoped, tag = 'input window, operand 1, single buffered']
    #allocation6 [shape = 's32[1]{0}', space=sflag, size = 0x4, scoped, tag = 'scoped memory for tpu_custom_call.1']
    #allocation7 [shape = 'u8[2048]{0}', space=vmem, size = 0x800, scoped, tag = 'input window, operand 2, single buffered']
    #allocation8 [shape = 'u8[524288]{0}', space=vmem, size = 0x80000, scoped, tag = 'input window, operand 3, single buffered']
    #allocation9 [shape = 's32[1]{0}', space=sflag, size = 0x4, scoped, tag = 'scoped memory for tpu_custom_call.1']
    #allocation10 [shape = 'u8[2048]{0}', space=vmem, size = 0x800, scoped, tag = 'input window, operand 4, single buffered']
    #allocation11 [shape = 'u8[4096]{0}', space=vmem, size = 0x1000, scoped, tag = 'output window, operand 0, single buffered']
    %10 = vsyncpa [#allocation3], 0
    %11 = vsyncpa [#allocation6], 0
    %12 = vsyncpa [#allocation9], 0
    %13 = vsyncpa [#allocation4], 0
    // Predicated region
    $region2: #{tpu_custom_call.1} parent=1 // pred_check
      _
    $region3: #{tpu_custom_call.1} parent=1 // pred_check_branch
      %15 = sbr.rel (0) target = $region5
    $region4: #{tpu_custom_call.1} parent=1 // pred_region
      %17 = vsyncadd [#allocation3], 0
      %s19 = sshll.u32 %s0, 4
      %s20 = int_to_ptr.hbm [resolvable:$true] %s19
      %s21 = sshll.u32 [#allocation2], 4
      %s22 = int_to_ptr.vmem [resolvable:$true] %s21
      %24 = dma.hbm_to_vmem [thread:$0]  %s20, 96, %s22, [#allocation3]
    $region5: #{tpu_custom_call.1} parent=1 // pred_fallthru
      _
    // Predicated region
    $region6: #{tpu_custom_call.1} parent=1 // pred_check
      _
    $region7: #{tpu_custom_call.1} parent=1 // pred_check_branch
      %26 = sbr.rel (0) target = $region9
    $region8: #{tpu_custom_call.1} parent=1 // pred_region
      %28 = vsyncadd [#allocation6], 0
      %s29 = sshll.u32 %s1, 4
      %s30 = int_to_ptr.hbm [resolvable:$true] %s29
      %s31 = sshll.u32 [#allocation5], 4
      %s32 = int_to_ptr.vmem [resolvable:$true] %s31
      %37 = dma.hbm_to_vmem [thread:$0]  %s30, 24576, %s32, [#allocation6], 256, 256, 16
    $region9: #{tpu_custom_call.1} parent=1 // pred_fallthru
      _
    // Predicated region
    $region10: #{tpu_custom_call.1} parent=1 // pred_check
      _
    $region11: #{tpu_custom_call.1} parent=1 // pred_check_branch
      %39 = sbr.rel (0) target = $region13
    $region12: #{tpu_custom_call.1} parent=1 // pred_region
      %41 = vsyncadd [#allocation6], 0
      %s43 = sshll.u32 %s2, 4
      %s44 = int_to_ptr.hbm [resolvable:$true] %s43
      %s45 = sshll.u32 [#allocation7], 4
      %s46 = int_to_ptr.vmem [resolvable:$true] %s45
      %48 = dma.hbm_to_vmem [thread:$0]  %s44, 64, %s46, [#allocation6]
    $region13: #{tpu_custom_call.1} parent=1 // pred_fallthru
      _
    // Predicated region
    $region14: #{tpu_custom_call.1} parent=1 // pred_check
      _
    $region15: #{tpu_custom_call.1} parent=1 // pred_check_branch
      %50 = sbr.rel (0) target = $region17
    $region16: #{tpu_custom_call.1} parent=1 // pred_region
      %52 = vsyncadd [#allocation9], 0
      %s53 = sshll.u32 %s3, 4
      %s54 = int_to_ptr.hbm [resolvable:$true] %s53
      %s55 = sshll.u32 [#allocation8], 4
      %s56 = int_to_ptr.vmem [resolvable:$true] %s55
      %61 = dma.hbm_to_vmem [thread:$0]  %s54, 16384, %s56, [#allocation9], 256, 256, 16
    $region17: #{tpu_custom_call.1} parent=1 // pred_fallthru
      _
    // Predicated region
    $region18: #{tpu_custom_call.1} parent=1 // pred_check
      _
    $region19: #{tpu_custom_call.1} parent=1 // pred_check_branch
      %63 = sbr.rel (0) target = $region21
    $region20: #{tpu_custom_call.1} parent=1 // pred_region
      %65 = vsyncadd [#allocation9], 0
      %s67 = sshll.u32 %s4, 4
      %s68 = int_to_ptr.hbm [resolvable:$true] %s67
      %s69 = sshll.u32 [#allocation10], 4
      %s70 = int_to_ptr.vmem [resolvable:$true] %s69
      %72 = dma.hbm_to_vmem [thread:$0]  %s68, 64, %s70, [#allocation9]
    $region21: #{tpu_custom_call.1} parent=1 // pred_fallthru
      _
    // Predicated region
    $region22: #{tpu_custom_call.1} parent=1 // pred_check
      _
    $region23: #{tpu_custom_call.1} parent=1 // pred_check_branch
      %74 = sbr.rel (0) target = $region25
    $region24: #{tpu_custom_call.1} parent=1 // pred_region
      %76 = dma.done [#allocation3], 96
    $region25: #{tpu_custom_call.1} parent=1 // pred_fallthru
      _
    // Predicated region
    $region26: #{tpu_custom_call.1} parent=1 // pred_check
      _
    $region27: #{tpu_custom_call.1} parent=1 // pred_check_branch
      %78 = sbr.rel (0) target = $region29
    $region28: #{tpu_custom_call.1} parent=1 // pred_region
      %80 = dma.done [#allocation6], 24576
    $region29: #{tpu_custom_call.1} parent=1 // pred_fallthru
      _
    // Predicated region
    $region30: #{tpu_custom_call.1} parent=1 // pred_check
      _
    $region31: #{tpu_custom_call.1} parent=1 // pred_check_branch
      %82 = sbr.rel (0) target = $region33
    $region32: #{tpu_custom_call.1} parent=1 // pred_region
      %84 = dma.done [#allocation6], 64
    $region33: #{tpu_custom_call.1} parent=1 // pred_fallthru
      _
    // Predicated region
    $region34: #{tpu_custom_call.1} parent=1 // pred_check
      _
    $region35: #{tpu_custom_call.1} parent=1 // pred_check_branch
      %86 = sbr.rel (0) target = $region37
    $region36: #{tpu_custom_call.1} parent=1 // pred_region
      %88 = dma.done [#allocation9], 16384
    $region37: #{tpu_custom_call.1} parent=1 // pred_fallthru
      _
    // Predicated region
    $region38: #{tpu_custom_call.1} parent=1 // pred_check
      _
    $region39: #{tpu_custom_call.1} parent=1 // pred_check_branch
      %90 = sbr.rel (0) target = $region41
    $region40: #{tpu_custom_call.1} parent=1 // pred_region
      %92 = dma.done [#allocation9], 64
    $region41: #{tpu_custom_call.1} parent=1 // pred_fallthru
      _
    %v93 = vld [vmem:[#allocation2] sm:$0x3f]
    %v94 = vld [vmem:[#allocation5] sm:$0xff]
    %v95 = vld [vmem:[#allocation5 + $0x8] sm:$0xff]
    %v96 = vld [vmem:[#allocation5 + $0x10] sm:$0xff]
    %v97 = vld [vmem:[#allocation5 + $0x18] sm:$0xff]
    %v98 = vld [vmem:[#allocation5 + $0x20] sm:$0xff]
    %v99 = vld [vmem:[#allocation5 + $0x28] sm:$0xff]
    %v100 = vld [vmem:[#allocation5 + $0x30] sm:$0xff]
    %v101 = vld [vmem:[#allocation5 + $0x38] sm:$0xff]
    %v102 = vld [vmem:[#allocation5 + $0x40] sm:$0xff]
    %v103 = vld [vmem:[#allocation5 + $0x48] sm:$0xff]
    %v104 = vld [vmem:[#allocation5 + $0x50] sm:$0xff]
    %v105 = vld [vmem:[#allocation5 + $0x58] sm:$0xff]
    %v106 = vld [vmem:[#allocation5 + $0x60] sm:$0xff]
    %v107 = vld [vmem:[#allocation5 + $0x68] sm:$0xff]
    %v108 = vld [vmem:[#allocation5 + $0x70] sm:$0xff]
    %v109 = vld [vmem:[#allocation5 + $0x78] sm:$0xff]
    %v110 = vld [vmem:[#allocation5 + $0x80] sm:$0xff]
    %v111 = vld [vmem:[#allocation5 + $0x88] sm:$0xff]
    %v112 = vld [vmem:[#allocation5 + $0x90] sm:$0xff]
    %v113 = vld [vmem:[#allocation5 + $0x98] sm:$0xff]
    %v114 = vld [vmem:[#allocation5 + $0xa0] sm:$0xff]
    %v115 = vld [vmem:[#allocation5 + $0xa8] sm:$0xff]
    %v116 = vld [vmem:[#allocation5 + $0xb0] sm:$0xff]
    %v117 = vld [vmem:[#allocation5 + $0xb8] sm:$0xff]
    %v118 = vld [vmem:[#allocation5 + $0xc0] sm:$0xff]
    %v119 = vld [vmem:[#allocation5 + $0xc8] sm:$0xff]
    %v120 = vld [vmem:[#allocation5 + $0xd0] sm:$0xff]
    %v121 = vld [vmem:[#allocation5 + $0xd8] sm:$0xff]
    %v122 = vld [vmem:[#allocation5 + $0xe0] sm:$0xff]
    %v123 = vld [vmem:[#allocation5 + $0xe8] sm:$0xff]
    %v124 = vld [vmem:[#allocation5 + $0xf0] sm:$0xff]
    %v125 = vld [vmem:[#allocation5 + $0xf8] sm:$0xff]
    %v126 = vld [vmem:[#allocation5 + $0x100] sm:$0xff]
    %v127 = vld [vmem:[#allocation5 + $0x108] sm:$0xff]
    %v128 = vld [vmem:[#allocation5 + $0x110] sm:$0xff]
    %v129 = vld [vmem:[#allocation5 + $0x118] sm:$0xff]
    %v130 = vld [vmem:[#allocation5 + $0x120] sm:$0xff]
    %v131 = vld [vmem:[#allocation5 + $0x128] sm:$0xff]
    %v132 = vld [vmem:[#allocation5 + $0x130] sm:$0xff]
    %v133 = vld [vmem:[#allocation5 + $0x138] sm:$0xff]
    %v134 = vld [vmem:[#allocation5 + $0x140] sm:$0xff]
    %v135 = vld [vmem:[#allocation5 + $0x148] sm:$0xff]
    %v136 = vld [vmem:[#allocation5 + $0x150] sm:$0xff]
    %v137 = vld [vmem:[#allocation5 + $0x158] sm:$0xff]
    %v138 = vld [vmem:[#allocation5 + $0x160] sm:$0xff]
    %v139 = vld [vmem:[#allocation5 + $0x168] sm:$0xff]
    %v140 = vld [vmem:[#allocation5 + $0x170] sm:$0xff]
    %v141 = vld [vmem:[#allocation5 + $0x178] sm:$0xff]
    %v142 = vld [vmem:[#allocation5 + $0x180] sm:$0xff]
    %v143 = vld [vmem:[#allocation5 + $0x188] sm:$0xff]
    %v144 = vld [vmem:[#allocation5 + $0x190] sm:$0xff]
    %v145 = vld [vmem:[#allocation5 + $0x198] sm:$0xff]
    %v146 = vld [vmem:[#allocation5 + $0x1a0] sm:$0xff]
    %v147 = vld [vmem:[#allocation5 + $0x1a8] sm:$0xff]
    %v148 = vld [vmem:[#allocation5 + $0x1b0] sm:$0xff]
    %v149 = vld [vmem:[#allocation5 + $0x1b8] sm:$0xff]
    %v150 = vld [vmem:[#allocation5 + $0x1c0] sm:$0xff]
    %v151 = vld [vmem:[#allocation5 + $0x1c8] sm:$0xff]
    %v152 = vld [vmem:[#allocation5 + $0x1d0] sm:$0xff]
    %v153 = vld [vmem:[#allocation5 + $0x1d8] sm:$0xff]
    %v154 = vld [vmem:[#allocation5 + $0x1e0] sm:$0xff]
    %v155 = vld [vmem:[#allocation5 + $0x1e8] sm:$0xff]
    %v156 = vld [vmem:[#allocation5 + $0x1f0] sm:$0xff]
    %v157 = vld [vmem:[#allocation5 + $0x1f8] sm:$0xff]
    %v158 = vld [vmem:[#allocation5 + $0x200] sm:$0xff]
    %v159 = vld [vmem:[#allocation5 + $0x208] sm:$0xff]
    %v160 = vld [vmem:[#allocation5 + $0x210] sm:$0xff]
    %v161 = vld [vmem:[#allocation5 + $0x218] sm:$0xff]
    %v162 = vld [vmem:[#allocation5 + $0x220] sm:$0xff]
    %v163 = vld [vmem:[#allocation5 + $0x228] sm:$0xff]
    %v164 = vld [vmem:[#allocation5 + $0x230] sm:$0xff]
    %v165 = vld [vmem:[#allocation5 + $0x238] sm:$0xff]
    %v166 = vld [vmem:[#allocation5 + $0x240] sm:$0xff]
    %v167 = vld [vmem:[#allocation5 + $0x248] sm:$0xff]
    %v168 = vld [vmem:[#allocation5 + $0x250] sm:$0xff]
    %v169 = vld [vmem:[#allocation5 + $0x258] sm:$0xff]
    %v170 = vld [vmem:[#allocation5 + $0x260] sm:$0xff]
    %v171 = vld [vmem:[#allocation5 + $0x268] sm:$0xff]
    %v172 = vld [vmem:[#allocation5 + $0x270] sm:$0xff]
    %v173 = vld [vmem:[#allocation5 + $0x278] sm:$0xff]
    %v174 = vld [vmem:[#allocation5 + $0x280] sm:$0xff]
    %v175 = vld [vmem:[#allocation5 + $0x288] sm:$0xff]
    %v176 = vld [vmem:[#allocation5 + $0x290] sm:$0xff]
    %v177 = vld [vmem:[#allocation5 + $0x298] sm:$0xff]
    %v178 = vld [vmem:[#allocation5 + $0x2a0] sm:$0xff]
    %v179 = vld [vmem:[#allocation5 + $0x2a8] sm:$0xff]
    %v180 = vld [vmem:[#allocation5 + $0x2b0] sm:$0xff]
    %v181 = vld [vmem:[#allocation5 + $0x2b8] sm:$0xff]
    %v182 = vld [vmem:[#allocation5 + $0x2c0] sm:$0xff]
    %v183 = vld [vmem:[#allocation5 + $0x2c8] sm:$0xff]
    %v184 = vld [vmem:[#allocation5 + $0x2d0] sm:$0xff]
    %v185 = vld [vmem:[#allocation5 + $0x2d8] sm:$0xff]
    %v186 = vld [vmem:[#allocation5 + $0x2e0] sm:$0xff]
    %v187 = vld [vmem:[#allocation5 + $0x2e8] sm:$0xff]
    %v188 = vld [vmem:[#allocation5 + $0x2f0] sm:$0xff]
    %v189 = vld [vmem:[#allocation5 + $0x2f8] sm:$0xff]
    %v190 = vld [vmem:[#allocation5 + $0x300] sm:$0xff]
    %v191 = vld [vmem:[#allocation5 + $0x308] sm:$0xff]
    %v192 = vld [vmem:[#allocation5 + $0x310] sm:$0xff]
    %v193 = vld [vmem:[#allocation5 + $0x318] sm:$0xff]
    %v194 = vld [vmem:[#allocation5 + $0x320] sm:$0xff]
    %v195 = vld [vmem:[#allocation5 + $0x328] sm:$0xff]
    %v196 = vld [vmem:[#allocation5 + $0x330] sm:$0xff]
    %v197 = vld [vmem:[#allocation5 + $0x338] sm:$0xff]
    %v198 = vld [vmem:[#allocation5 + $0x340] sm:$0xff]
    %v199 = vld [vmem:[#allocation5 + $0x348] sm:$0xff]
    %v200 = vld [vmem:[#allocation5 + $0x350] sm:$0xff]
    %v201 = vld [vmem:[#allocation5 + $0x358] sm:$0xff]
    %v202 = vld [vmem:[#allocation5 + $0x360] sm:$0xff]
    %v203 = vld [vmem:[#allocation5 + $0x368] sm:$0xff]
    %v204 = vld [vmem:[#allocation5 + $0x370] sm:$0xff]
    %v205 = vld [vmem:[#allocation5 + $0x378] sm:$0xff]
    %v206 = vld [vmem:[#allocation5 + $0x380] sm:$0xff]
    %v207 = vld [vmem:[#allocation5 + $0x388] sm:$0xff]
    %v208 = vld [vmem:[#allocation5 + $0x390] sm:$0xff]
    %v209 = vld [vmem:[#allocation5 + $0x398] sm:$0xff]
    %v210 = vld [vmem:[#allocation5 + $0x3a0] sm:$0xff]
    %v211 = vld [vmem:[#allocation5 + $0x3a8] sm:$0xff]
    %v212 = vld [vmem:[#allocation5 + $0x3b0] sm:$0xff]
    %v213 = vld [vmem:[#allocation5 + $0x3b8] sm:$0xff]
    %v214 = vld [vmem:[#allocation5 + $0x3c0] sm:$0xff]
    %v215 = vld [vmem:[#allocation5 + $0x3c8] sm:$0xff]
    %v216 = vld [vmem:[#allocation5 + $0x3d0] sm:$0xff]
    %v217 = vld [vmem:[#allocation5 + $0x3d8] sm:$0xff]
    %v218 = vld [vmem:[#allocation5 + $0x3e0] sm:$0xff]
    %v219 = vld [vmem:[#allocation5 + $0x3e8] sm:$0xff]
    %v220 = vld [vmem:[#allocation5 + $0x3f0] sm:$0xff]
    %v221 = vld [vmem:[#allocation5 + $0x3f8] sm:$0xff]
    %v222 = vld [vmem:[#allocation5 + $0x400] sm:$0xff]
    %v223 = vld [vmem:[#allocation5 + $0x408] sm:$0xff]
    %v224 = vld [vmem:[#allocation5 + $0x410] sm:$0xff]
    %v225 = vld [vmem:[#allocation5 + $0x418] sm:$0xff]
    %v226 = vld [vmem:[#allocation5 + $0x420] sm:$0xff]
    %v227 = vld [vmem:[#allocation5 + $0x428] sm:$0xff]
    %v228 = vld [vmem:[#allocation5 + $0x430] sm:$0xff]
    %v229 = vld [vmem:[#allocation5 + $0x438] sm:$0xff]
    %v230 = vld [vmem:[#allocation5 + $0x440] sm:$0xff]
    %v231 = vld [vmem:[#allocation5 + $0x448] sm:$0xff]
    %v232 = vld [vmem:[#allocation5 + $0x450] sm:$0xff]
    %v233 = vld [vmem:[#allocation5 + $0x458] sm:$0xff]
    %v234 = vld [vmem:[#allocation5 + $0x460] sm:$0xff]
    %v235 = vld [vmem:[#allocation5 + $0x468] sm:$0xff]
    %v236 = vld [vmem:[#allocation5 + $0x470] sm:$0xff]
    %v237 = vld [vmem:[#allocation5 + $0x478] sm:$0xff]
    %v238 = vld [vmem:[#allocation5 + $0x480] sm:$0xff]
    %v239 = vld [vmem:[#allocation5 + $0x488] sm:$0xff]
    %v240 = vld [vmem:[#allocation5 + $0x490] sm:$0xff]
    %v241 = vld [vmem:[#allocation5 + $0x498] sm:$0xff]
    %v242 = vld [vmem:[#allocation5 + $0x4a0] sm:$0xff]
    %v243 = vld [vmem:[#allocation5 + $0x4a8] sm:$0xff]
    %v244 = vld [vmem:[#allocation5 + $0x4b0] sm:$0xff]
    %v245 = vld [vmem:[#allocation5 + $0x4b8] sm:$0xff]
    %v246 = vld [vmem:[#allocation5 + $0x4c0] sm:$0xff]
    %v247 = vld [vmem:[#allocation5 + $0x4c8] sm:$0xff]
    %v248 = vld [vmem:[#allocation5 + $0x4d0] sm:$0xff]
    %v249 = vld [vmem:[#allocation5 + $0x4d8] sm:$0xff]
    %v250 = vld [vmem:[#allocation5 + $0x4e0] sm:$0xff]
    %v251 = vld [vmem:[#allocation5 + $0x4e8] sm:$0xff]
    %v252 = vld [vmem:[#allocation5 + $0x4f0] sm:$0xff]
    %v253 = vld [vmem:[#allocation5 + $0x4f8] sm:$0xff]
    %v254 = vld [vmem:[#allocation5 + $0x500] sm:$0xff]
    %v255 = vld [vmem:[#allocation5 + $0x508] sm:$0xff]
    %v256 = vld [vmem:[#allocation5 + $0x510] sm:$0xff]
    %v257 = vld [vmem:[#allocation5 + $0x518] sm:$0xff]
    %v258 = vld [vmem:[#allocation5 + $0x520] sm:$0xff]
    %v259 = vld [vmem:[#allocation5 + $0x528] sm:$0xff]
    %v260 = vld [vmem:[#allocation5 + $0x530] sm:$0xff]
    %v261 = vld [vmem:[#allocation5 + $0x538] sm:$0xff]
    %v262 = vld [vmem:[#allocation5 + $0x540] sm:$0xff]
    %v263 = vld [vmem:[#allocation5 + $0x548] sm:$0xff]
    %v264 = vld [vmem:[#allocation5 + $0x550] sm:$0xff]
    %v265 = vld [vmem:[#allocation5 + $0x558] sm:$0xff]
    %v266 = vld [vmem:[#allocation5 + $0x560] sm:$0xff]
    %v267 = vld [vmem:[#allocation5 + $0x568] sm:$0xff]
    %v268 = vld [vmem:[#allocation5 + $0x570] sm:$0xff]
    %v269 = vld [vmem:[#allocation5 + $0x578] sm:$0xff]
    %v270 = vld [vmem:[#allocation5 + $0x580] sm:$0xff]
    %v271 = vld [vmem:[#allocation5 + $0x588] sm:$0xff]
    %v272 = vld [vmem:[#allocation5 + $0x590] sm:$0xff]
    %v273 = vld [vmem:[#allocation5 + $0x598] sm:$0xff]
    %v274 = vld [vmem:[#allocation5 + $0x5a0] sm:$0xff]
    %v275 = vld [vmem:[#allocation5 + $0x5a8] sm:$0xff]
    %v276 = vld [vmem:[#allocation5 + $0x5b0] sm:$0xff]
    %v277 = vld [vmem:[#allocation5 + $0x5b8] sm:$0xff]
    %v278 = vld [vmem:[#allocation5 + $0x5c0] sm:$0xff]
    %v279 = vld [vmem:[#allocation5 + $0x5c8] sm:$0xff]
    %v280 = vld [vmem:[#allocation5 + $0x5d0] sm:$0xff]
    %v281 = vld [vmem:[#allocation5 + $0x5d8] sm:$0xff]
    %v282 = vld [vmem:[#allocation5 + $0x5e0] sm:$0xff]
    %v283 = vld [vmem:[#allocation5 + $0x5e8] sm:$0xff]
    %v284 = vld [vmem:[#allocation5 + $0x5f0] sm:$0xff]
    %v285 = vld [vmem:[#allocation5 + $0x5f8] sm:$0xff]
    %v286 = vld [vmem:[#allocation7] sm:$0xf]
    %v288 = vperm.slane %v286, 0
    %v289 = vperm.slane %v286, 1
    %v290 = vperm.slane %v286, 2
    %v291 = vperm.slane %v286, 3
    %297 = vst [vmem:[#allocation1] ss:$9 sm:$0xff] %v93
    %v298 = vld [vmem:[#allocation1] sm:$0xff]
    %v299 = vld [vmem:[#allocation1 + $0x9] sm:$0xff]
    %v300 = vld [vmem:[#allocation1 + $0x12] sm:$0xff]
    %v301 = vld [vmem:[#allocation1 + $0x1b] sm:$0xff]
    %v302 = vld [vmem:[#allocation1 + $0x24] sm:$0xff]
    %v303 = vld [vmem:[#allocation1 + $0x2d] sm:$0xff]
    %v502 = vunpack.c.l.b16 %v94
    %v503 = vunpack.c.h.b16 %v94
    %v504 = vunpack.c.l.b16 %v95
    %v505 = vunpack.c.h.b16 %v95
    %v506 = vunpack.c.l.b16 %v96
    %v507 = vunpack.c.h.b16 %v96
    %v508 = vunpack.c.l.b16 %v97
    %v509 = vunpack.c.h.b16 %v97
    %v510 = vunpack.c.l.b16 %v98
    %v511 = vunpack.c.h.b16 %v98
    %v512 = vunpack.c.l.b16 %v99
    %v513 = vunpack.c.h.b16 %v99
    %v514 = vunpack.c.l.b16 %v100
    %v515 = vunpack.c.h.b16 %v100
    %v516 = vunpack.c.l.b16 %v101
    %v517 = vunpack.c.h.b16 %v101
    %v518 = vunpack.c.l.b16 %v102
    %v519 = vunpack.c.h.b16 %v102
    %v520 = vunpack.c.l.b16 %v103
    %v521 = vunpack.c.h.b16 %v103
    %v522 = vunpack.c.l.b16 %v104
    %v523 = vunpack.c.h.b16 %v104
    %v524 = vunpack.c.l.b16 %v105
    %v525 = vunpack.c.h.b16 %v105
    %v526 = vunpack.c.l.b16 %v106
    %v527 = vunpack.c.h.b16 %v106
    %v528 = vunpack.c.l.b16 %v107
    %v529 = vunpack.c.h.b16 %v107
    %v530 = vunpack.c.l.b16 %v108
    %v531 = vunpack.c.h.b16 %v108
    %v532 = vunpack.c.l.b16 %v109
    %v533 = vunpack.c.h.b16 %v109
    %v534 = vunpack.c.l.b16 %v110
    %v535 = vunpack.c.h.b16 %v110
    %v536 = vunpack.c.l.b16 %v111
    %v537 = vunpack.c.h.b16 %v111
    %v538 = vunpack.c.l.b16 %v112
    %v539 = vunpack.c.h.b16 %v112
    %v540 = vunpack.c.l.b16 %v113
    %v541 = vunpack.c.h.b16 %v113
    %v542 = vunpack.c.l.b16 %v114
    %v543 = vunpack.c.h.b16 %v114
    %v544 = vunpack.c.l.b16 %v115
    %v545 = vunpack.c.h.b16 %v115
    %v546 = vunpack.c.l.b16 %v116
    %v547 = vunpack.c.h.b16 %v116
    %v548 = vunpack.c.l.b16 %v117
    %v549 = vunpack.c.h.b16 %v117
    %v550 = vunpack.c.l.b16 %v118
    %v551 = vunpack.c.h.b16 %v118
    %v552 = vunpack.c.l.b16 %v119
    %v553 = vunpack.c.h.b16 %v119
    %v554 = vunpack.c.l.b16 %v120
    %v555 = vunpack.c.h.b16 %v120
    %v556 = vunpack.c.l.b16 %v121
    %v557 = vunpack.c.h.b16 %v121
    %v558 = vunpack.c.l.b16 %v122
    %v559 = vunpack.c.h.b16 %v122
    %v560 = vunpack.c.l.b16 %v123
    %v561 = vunpack.c.h.b16 %v123
    %v562 = vunpack.c.l.b16 %v124
    %v563 = vunpack.c.h.b16 %v124
    %v564 = vunpack.c.l.b16 %v125
    %v565 = vunpack.c.h.b16 %v125
    %v566 = vunpack.c.l.b16 %v126
    %v567 = vunpack.c.h.b16 %v126
    %v568 = vunpack.c.l.b16 %v127
    %v569 = vunpack.c.h.b16 %v127
    %v570 = vunpack.c.l.b16 %v128
    %v571 = vunpack.c.h.b16 %v128
    %v572 = vunpack.c.l.b16 %v129
    %v573 = vunpack.c.h.b16 %v129
    %v574 = vunpack.c.l.b16 %v130
    %v575 = vunpack.c.h.b16 %v130
    %v576 = vunpack.c.l.b16 %v131
    %v577 = vunpack.c.h.b16 %v131
    %v578 = vunpack.c.l.b16 %v132
    %v579 = vunpack.c.h.b16 %v132
    %v580 = vunpack.c.l.b16 %v133
    %v581 = vunpack.c.h.b16 %v133
    %v582 = vunpack.c.l.b16 %v134
    %v583 = vunpack.c.h.b16 %v134
    %v584 = vunpack.c.l.b16 %v135
    %v585 = vunpack.c.h.b16 %v135
    %v586 = vunpack.c.l.b16 %v136
    %v587 = vunpack.c.h.b16 %v136
    %v588 = vunpack.c.l.b16 %v137
    %v589 = vunpack.c.h.b16 %v137
    %v590 = vunpack.c.l.b16 %v138
    %v591 = vunpack.c.h.b16 %v138
    %v592 = vunpack.c.l.b16 %v139
    %v593 = vunpack.c.h.b16 %v139
    %v594 = vunpack.c.l.b16 %v140
    %v595 = vunpack.c.h.b16 %v140
    %v596 = vunpack.c.l.b16 %v141
    %v597 = vunpack.c.h.b16 %v141
    %v598 = vunpack.c.l.b16 %v142
    %v599 = vunpack.c.h.b16 %v142
    %v600 = vunpack.c.l.b16 %v143
    %v601 = vunpack.c.h.b16 %v143
    %v602 = vunpack.c.l.b16 %v144
    %v603 = vunpack.c.h.b16 %v144
    %v604 = vunpack.c.l.b16 %v145
    %v605 = vunpack.c.h.b16 %v145
    %v606 = vunpack.c.l.b16 %v146
    %v607 = vunpack.c.h.b16 %v146
    %v608 = vunpack.c.l.b16 %v147
    %v609 = vunpack.c.h.b16 %v147
    %v610 = vunpack.c.l.b16 %v148
    %v611 = vunpack.c.h.b16 %v148
    %v612 = vunpack.c.l.b16 %v149
    %v613 = vunpack.c.h.b16 %v149
    %v614 = vunpack.c.l.b16 %v150
    %v615 = vunpack.c.h.b16 %v150
    %v616 = vunpack.c.l.b16 %v151
    %v617 = vunpack.c.h.b16 %v151
    %v618 = vunpack.c.l.b16 %v152
    %v619 = vunpack.c.h.b16 %v152
    %v620 = vunpack.c.l.b16 %v153
    %v621 = vunpack.c.h.b16 %v153
    %v622 = vunpack.c.l.b16 %v154
    %v623 = vunpack.c.h.b16 %v154
    %v624 = vunpack.c.l.b16 %v155
    %v625 = vunpack.c.h.b16 %v155
    %v626 = vunpack.c.l.b16 %v156
    %v627 = vunpack.c.h.b16 %v156
    %v628 = vunpack.c.l.b16 %v157
    %v629 = vunpack.c.h.b16 %v157
    %v630 = vunpack.c.l.b16 %v158
    %v631 = vunpack.c.h.b16 %v158
    %v632 = vunpack.c.l.b16 %v159
    %v633 = vunpack.c.h.b16 %v159
    %v634 = vunpack.c.l.b16 %v160
    %v635 = vunpack.c.h.b16 %v160
    %v636 = vunpack.c.l.b16 %v161
    %v637 = vunpack.c.h.b16 %v161
    %v638 = vunpack.c.l.b16 %v162
    %v639 = vunpack.c.h.b16 %v162
    %v640 = vunpack.c.l.b16 %v163
    %v641 = vunpack.c.h.b16 %v163
    %v642 = vunpack.c.l.b16 %v164
    %v643 = vunpack.c.h.b16 %v164
    %v644 = vunpack.c.l.b16 %v165
    %v645 = vunpack.c.h.b16 %v165
    %v646 = vunpack.c.l.b16 %v166
    %v647 = vunpack.c.h.b16 %v166
    %v648 = vunpack.c.l.b16 %v167
    %v649 = vunpack.c.h.b16 %v167
    %v650 = vunpack.c.l.b16 %v168
    %v651 = vunpack.c.h.b16 %v168
    %v652 = vunpack.c.l.b16 %v169
    %v653 = vunpack.c.h.b16 %v169
    %v654 = vunpack.c.l.b16 %v170
    %v655 = vunpack.c.h.b16 %v170
    %v656 = vunpack.c.l.b16 %v171
    %v657 = vunpack.c.h.b16 %v171
    %v658 = vunpack.c.l.b16 %v172
    %v659 = vunpack.c.h.b16 %v172
    %v660 = vunpack.c.l.b16 %v173
    %v661 = vunpack.c.h.b16 %v173
    %v662 = vunpack.c.l.b16 %v174
    %v663 = vunpack.c.h.b16 %v174
    %v664 = vunpack.c.l.b16 %v175
    %v665 = vunpack.c.h.b16 %v175
    %v666 = vunpack.c.l.b16 %v176
    %v667 = vunpack.c.h.b16 %v176
    %v668 = vunpack.c.l.b16 %v177
    %v669 = vunpack.c.h.b16 %v177
    %v670 = vunpack.c.l.b16 %v178
    %v671 = vunpack.c.h.b16 %v178
    %v672 = vunpack.c.l.b16 %v179
    %v673 = vunpack.c.h.b16 %v179
    %v674 = vunpack.c.l.b16 %v180
    %v675 = vunpack.c.h.b16 %v180
    %v676 = vunpack.c.l.b16 %v181
    %v677 = vunpack.c.h.b16 %v181
    %v678 = vunpack.c.l.b16 %v182
    %v679 = vunpack.c.h.b16 %v182
    %v680 = vunpack.c.l.b16 %v183
    %v681 = vunpack.c.h.b16 %v183
    %v682 = vunpack.c.l.b16 %v184
    %v683 = vunpack.c.h.b16 %v184
    %v684 = vunpack.c.l.b16 %v185
    %v685 = vunpack.c.h.b16 %v185
    %v686 = vunpack.c.l.b16 %v186
    %v687 = vunpack.c.h.b16 %v186
    %v688 = vunpack.c.l.b16 %v187
    %v689 = vunpack.c.h.b16 %v187
    %v690 = vunpack.c.l.b16 %v188
    %v691 = vunpack.c.h.b16 %v188
    %v692 = vunpack.c.l.b16 %v189
    %v693 = vunpack.c.h.b16 %v189
    %v694 = vunpack.c.l.b16 %v190
    %v695 = vunpack.c.h.b16 %v190
    %v696 = vunpack.c.l.b16 %v191
    %v697 = vunpack.c.h.b16 %v191
    %v698 = vunpack.c.l.b16 %v192
    %v699 = vunpack.c.h.b16 %v192
    %v700 = vunpack.c.l.b16 %v193
    %v701 = vunpack.c.h.b16 %v193
    %v702 = vunpack.c.l.b16 %v194
    %v703 = vunpack.c.h.b16 %v194
    %v704 = vunpack.c.l.b16 %v195
    %v705 = vunpack.c.h.b16 %v195
    %v706 = vunpack.c.l.b16 %v196
    %v707 = vunpack.c.h.b16 %v196
    %v708 = vunpack.c.l.b16 %v197
    %v709 = vunpack.c.h.b16 %v197
    %v710 = vunpack.c.l.b16 %v198
    %v711 = vunpack.c.h.b16 %v198
    %v712 = vunpack.c.l.b16 %v199
    %v713 = vunpack.c.h.b16 %v199
    %v714 = vunpack.c.l.b16 %v200
    %v715 = vunpack.c.h.b16 %v200
    %v716 = vunpack.c.l.b16 %v201
    %v717 = vunpack.c.h.b16 %v201
    %v718 = vunpack.c.l.b16 %v202
    %v719 = vunpack.c.h.b16 %v202
    %v720 = vunpack.c.l.b16 %v203
    %v721 = vunpack.c.h.b16 %v203
    %v722 = vunpack.c.l.b16 %v204
    %v723 = vunpack.c.h.b16 %v204
    %v724 = vunpack.c.l.b16 %v205
    %v725 = vunpack.c.h.b16 %v205
    %v726 = vunpack.c.l.b16 %v206
    %v727 = vunpack.c.h.b16 %v206
    %v728 = vunpack.c.l.b16 %v207
    %v729 = vunpack.c.h.b16 %v207
    %v730 = vunpack.c.l.b16 %v208
    %v731 = vunpack.c.h.b16 %v208
    %v732 = vunpack.c.l.b16 %v209
    %v733 = vunpack.c.h.b16 %v209
    %v734 = vunpack.c.l.b16 %v210
    %v735 = vunpack.c.h.b16 %v210
    %v736 = vunpack.c.l.b16 %v211
    %v737 = vunpack.c.h.b16 %v211
    %v738 = vunpack.c.l.b16 %v212
    %v739 = vunpack.c.h.b16 %v212
    %v740 = vunpack.c.l.b16 %v213
    %v741 = vunpack.c.h.b16 %v213
    %v742 = vunpack.c.l.b16 %v214
    %v743 = vunpack.c.h.b16 %v214
    %v744 = vunpack.c.l.b16 %v215
    %v745 = vunpack.c.h.b16 %v215
    %v746 = vunpack.c.l.b16 %v216
    %v747 = vunpack.c.h.b16 %v216
    %v748 = vunpack.c.l.b16 %v217
    %v749 = vunpack.c.h.b16 %v217
    %v750 = vunpack.c.l.b16 %v218
    %v751 = vunpack.c.h.b16 %v218
    %v752 = vunpack.c.l.b16 %v219
    %v753 = vunpack.c.h.b16 %v219
    %v754 = vunpack.c.l.b16 %v220
    %v755 = vunpack.c.h.b16 %v220
    %v756 = vunpack.c.l.b16 %v221
    %v757 = vunpack.c.h.b16 %v221
    %v758 = vunpack.c.l.b16 %v222
    %v759 = vunpack.c.h.b16 %v222
    %v760 = vunpack.c.l.b16 %v223
    %v761 = vunpack.c.h.b16 %v223
    %v762 = vunpack.c.l.b16 %v224
    %v763 = vunpack.c.h.b16 %v224
    %v764 = vunpack.c.l.b16 %v225
    %v765 = vunpack.c.h.b16 %v225
    %v766 = vunpack.c.l.b16 %v226
    %v767 = vunpack.c.h.b16 %v226
    %v768 = vunpack.c.l.b16 %v227
    %v769 = vunpack.c.h.b16 %v227
    %v770 = vunpack.c.l.b16 %v228
    %v771 = vunpack.c.h.b16 %v228
    %v772 = vunpack.c.l.b16 %v229
    %v773 = vunpack.c.h.b16 %v229
    %v774 = vunpack.c.l.b16 %v230
    %v775 = vunpack.c.h.b16 %v230
    %v776 = vunpack.c.l.b16 %v231
    %v777 = vunpack.c.h.b16 %v231
    %v778 = vunpack.c.l.b16 %v232
    %v779 = vunpack.c.h.b16 %v232
    %v780 = vunpack.c.l.b16 %v233
    %v781 = vunpack.c.h.b16 %v233
    %v782 = vunpack.c.l.b16 %v234
    %v783 = vunpack.c.h.b16 %v234
    %v784 = vunpack.c.l.b16 %v235
    %v785 = vunpack.c.h.b16 %v235
    %v786 = vunpack.c.l.b16 %v236
    %v787 = vunpack.c.h.b16 %v236
    %v788 = vunpack.c.l.b16 %v237
    %v789 = vunpack.c.h.b16 %v237
    %v790 = vunpack.c.l.b16 %v238
    %v791 = vunpack.c.h.b16 %v238
    %v792 = vunpack.c.l.b16 %v239
    %v793 = vunpack.c.h.b16 %v239
    %v794 = vunpack.c.l.b16 %v240
    %v795 = vunpack.c.h.b16 %v240
    %v796 = vunpack.c.l.b16 %v241
    %v797 = vunpack.c.h.b16 %v241
    %v798 = vunpack.c.l.b16 %v242
    %v799 = vunpack.c.h.b16 %v242
    %v800 = vunpack.c.l.b16 %v243
    %v801 = vunpack.c.h.b16 %v243
    %v802 = vunpack.c.l.b16 %v244
    %v803 = vunpack.c.h.b16 %v244
    %v804 = vunpack.c.l.b16 %v245
    %v805 = vunpack.c.h.b16 %v245
    %v806 = vunpack.c.l.b16 %v246
    %v807 = vunpack.c.h.b16 %v246
    %v808 = vunpack.c.l.b16 %v247
    %v809 = vunpack.c.h.b16 %v247
    %v810 = vunpack.c.l.b16 %v248
    %v811 = vunpack.c.h.b16 %v248
    %v812 = vunpack.c.l.b16 %v249
    %v813 = vunpack.c.h.b16 %v249
    %v814 = vunpack.c.l.b16 %v250
    %v815 = vunpack.c.h.b16 %v250
    %v816 = vunpack.c.l.b16 %v251
    %v817 = vunpack.c.h.b16 %v251
    %v818 = vunpack.c.l.b16 %v252
    %v819 = vunpack.c.h.b16 %v252
    %v820 = vunpack.c.l.b16 %v253
    %v821 = vunpack.c.h.b16 %v253
    %v822 = vunpack.c.l.b16 %v254
    %v823 = vunpack.c.h.b16 %v254
    %v824 = vunpack.c.l.b16 %v255
    %v825 = vunpack.c.h.b16 %v255
    %v826 = vunpack.c.l.b16 %v256
    %v827 = vunpack.c.h.b16 %v256
    %v828 = vunpack.c.l.b16 %v257
    %v829 = vunpack.c.h.b16 %v257
    %v830 = vunpack.c.l.b16 %v258
    %v831 = vunpack.c.h.b16 %v258
    %v832 = vunpack.c.l.b16 %v259
    %v833 = vunpack.c.h.b16 %v259
    %v834 = vunpack.c.l.b16 %v260
    %v835 = vunpack.c.h.b16 %v260
    %v836 = vunpack.c.l.b16 %v261
    %v837 = vunpack.c.h.b16 %v261
    %v838 = vunpack.c.l.b16 %v262
    %v839 = vunpack.c.h.b16 %v262
    %v840 = vunpack.c.l.b16 %v263
    %v841 = vunpack.c.h.b16 %v263
    %v842 = vunpack.c.l.b16 %v264
    %v843 = vunpack.c.h.b16 %v264
    %v844 = vunpack.c.l.b16 %v265
    %v845 = vunpack.c.h.b16 %v265
    %v846 = vunpack.c.l.b16 %v266
    %v847 = vunpack.c.h.b16 %v266
    %v848 = vunpack.c.l.b16 %v267
    %v849 = vunpack.c.h.b16 %v267
    %v850 = vunpack.c.l.b16 %v268
    %v851 = vunpack.c.h.b16 %v268
    %v852 = vunpack.c.l.b16 %v269
    %v853 = vunpack.c.h.b16 %v269
    %v854 = vunpack.c.l.b16 %v270
    %v855 = vunpack.c.h.b16 %v270
    %v856 = vunpack.c.l.b16 %v271
    %v857 = vunpack.c.h.b16 %v271
    %v858 = vunpack.c.l.b16 %v272
    %v859 = vunpack.c.h.b16 %v272
    %v860 = vunpack.c.l.b16 %v273
    %v861 = vunpack.c.h.b16 %v273
    %v862 = vunpack.c.l.b16 %v274
    %v863 = vunpack.c.h.b16 %v274
    %v864 = vunpack.c.l.b16 %v275
    %v865 = vunpack.c.h.b16 %v275
    %v866 = vunpack.c.l.b16 %v276
    %v867 = vunpack.c.h.b16 %v276
    %v868 = vunpack.c.l.b16 %v277
    %v869 = vunpack.c.h.b16 %v277
    %v870 = vunpack.c.l.b16 %v278
    %v871 = vunpack.c.h.b16 %v278
    %v872 = vunpack.c.l.b16 %v279
    %v873 = vunpack.c.h.b16 %v279
    %v874 = vunpack.c.l.b16 %v280
    %v875 = vunpack.c.h.b16 %v280
    %v876 = vunpack.c.l.b16 %v281
    %v877 = vunpack.c.h.b16 %v281
    %v878 = vunpack.c.l.b16 %v282
    %v879 = vunpack.c.h.b16 %v282
    %v880 = vunpack.c.l.b16 %v283
    %v881 = vunpack.c.h.b16 %v283
    %v882 = vunpack.c.l.b16 %v284
    %v883 = vunpack.c.h.b16 %v284
    %v884 = vunpack.c.l.b16 %v285
    %v885 = vunpack.c.h.b16 %v285
    %v886 = vpack.c.b16 %v506, %v502
    %v887 = vpack.c.b16 %v507, %v503
    %v888 = vpack.c.b16 %v508, %v504
    %v889 = vpack.c.b16 %v509, %v505
    %v890 = vpack.c.b16 %v514, %v510
    %v891 = vpack.c.b16 %v515, %v511
    %v892 = vpack.c.b16 %v516, %v512
    %v893 = vpack.c.b16 %v517, %v513
    %v894 = vpack.c.b16 %v522, %v518
    %v895 = vpack.c.b16 %v523, %v519
    %v896 = vpack.c.b16 %v524, %v520
    %v897 = vpack.c.b16 %v525, %v521
    %v898 = vpack.c.b16 %v530, %v526
    %v899 = vpack.c.b16 %v531, %v527
    %v900 = vpack.c.b16 %v532, %v528
    %v901 = vpack.c.b16 %v533, %v529
    %v902 = vpack.c.b16 %v538, %v534
    %v903 = vpack.c.b16 %v539, %v535
    %v904 = vpack.c.b16 %v540, %v536
    %v905 = vpack.c.b16 %v541, %v537
    %v906 = vpack.c.b16 %v546, %v542
    %v907 = vpack.c.b16 %v547, %v543
    %v908 = vpack.c.b16 %v548, %v544
    %v909 = vpack.c.b16 %v549, %v545
    %v910 = vpack.c.b16 %v554, %v550
    %v911 = vpack.c.b16 %v555, %v551
    %v912 = vpack.c.b16 %v556, %v552
    %v913 = vpack.c.b16 %v557, %v553
    %v914 = vpack.c.b16 %v562, %v558
    %v915 = vpack.c.b16 %v563, %v559
    %v916 = vpack.c.b16 %v564, %v560
    %v917 = vpack.c.b16 %v565, %v561
    %v918 = vpack.c.b16 %v570, %v566
    %v919 = vpack.c.b16 %v571, %v567
    %v920 = vpack.c.b16 %v572, %v568
    %v921 = vpack.c.b16 %v573, %v569
    %v922 = vpack.c.b16 %v578, %v574
    %v923 = vpack.c.b16 %v579, %v575
    %v924 = vpack.c.b16 %v580, %v576
    %v925 = vpack.c.b16 %v581, %v577
    %v926 = vpack.c.b16 %v586, %v582
    %v927 = vpack.c.b16 %v587, %v583
    %v928 = vpack.c.b16 %v588, %v584
    %v929 = vpack.c.b16 %v589, %v585
    %v930 = vpack.c.b16 %v594, %v590
    %v931 = vpack.c.b16 %v595, %v591
    %v932 = vpack.c.b16 %v596, %v592
    %v933 = vpack.c.b16 %v597, %v593
    %v934 = vpack.c.b16 %v602, %v598
    %v935 = vpack.c.b16 %v603, %v599
    %v936 = vpack.c.b16 %v604, %v600
    %v937 = vpack.c.b16 %v605, %v601
    %v938 = vpack.c.b16 %v610, %v606
    %v939 = vpack.c.b16 %v611, %v607
    %v940 = vpack.c.b16 %v612, %v608
    %v941 = vpack.c.b16 %v613, %v609
    %v942 = vpack.c.b16 %v618, %v614
    %v943 = vpack.c.b16 %v619, %v615
    %v944 = vpack.c.b16 %v620, %v616
    %v945 = vpack.c.b16 %v621, %v617
    %v946 = vpack.c.b16 %v626, %v622
    %v947 = vpack.c.b16 %v627, %v623
    %v948 = vpack.c.b16 %v628, %v624
    %v949 = vpack.c.b16 %v629, %v625
    %v950 = vpack.c.b16 %v634, %v630
    %v951 = vpack.c.b16 %v635, %v631
    %v952 = vpack.c.b16 %v636, %v632
    %v953 = vpack.c.b16 %v637, %v633
    %v954 = vpack.c.b16 %v642, %v638
    %v955 = vpack.c.b16 %v643, %v639
    %v956 = vpack.c.b16 %v644, %v640
    %v957 = vpack.c.b16 %v645, %v641
    %v958 = vpack.c.b16 %v650, %v646
    %v959 = vpack.c.b16 %v651, %v647
    %v960 = vpack.c.b16 %v652, %v648
    %v961 = vpack.c.b16 %v653, %v649
    %v962 = vpack.c.b16 %v658, %v654
    %v963 = vpack.c.b16 %v659, %v655
    %v964 = vpack.c.b16 %v660, %v656
    %v965 = vpack.c.b16 %v661, %v657
    %v966 = vpack.c.b16 %v666, %v662
    %v967 = vpack.c.b16 %v667, %v663
    %v968 = vpack.c.b16 %v668, %v664
    %v969 = vpack.c.b16 %v669, %v665
    %v970 = vpack.c.b16 %v674, %v670
    %v971 = vpack.c.b16 %v675, %v671
    %v972 = vpack.c.b16 %v676, %v672
    %v973 = vpack.c.b16 %v677, %v673
    %v974 = vpack.c.b16 %v682, %v678
    %v975 = vpack.c.b16 %v683, %v679
    %v976 = vpack.c.b16 %v684, %v680
    %v977 = vpack.c.b16 %v685, %v681
    %v978 = vpack.c.b16 %v690, %v686
    %v979 = vpack.c.b16 %v691, %v687
    %v980 = vpack.c.b16 %v692, %v688
    %v981 = vpack.c.b16 %v693, %v689
    %v982 = vpack.c.b16 %v698, %v694
    %v983 = vpack.c.b16 %v699, %v695
    %v984 = vpack.c.b16 %v700, %v696
    %v985 = vpack.c.b16 %v701, %v697
    %v986 = vpack.c.b16 %v706, %v702
    %v987 = vpack.c.b16 %v707, %v703
    %v988 = vpack.c.b16 %v708, %v704
    %v989 = vpack.c.b16 %v709, %v705
    %v990 = vpack.c.b16 %v714, %v710
    %v991 = vpack.c.b16 %v715, %v711
    %v992 = vpack.c.b16 %v716, %v712
    %v993 = vpack.c.b16 %v717, %v713
    %v994 = vpack.c.b16 %v722, %v718
    %v995 = vpack.c.b16 %v723, %v719
    %v996 = vpack.c.b16 %v724, %v720
    %v997 = vpack.c.b16 %v725, %v721
    %v998 = vpack.c.b16 %v730, %v726
    %v999 = vpack.c.b16 %v731, %v727
    %v1000 = vpack.c.b16 %v732, %v728
    %v1001 = vpack.c.b16 %v733, %v729
    %v1002 = vpack.c.b16 %v738, %v734
    %v1003 = vpack.c.b16 %v739, %v735
    %v1004 = vpack.c.b16 %v740, %v736
    %v1005 = vpack.c.b16 %v741, %v737
    %v1006 = vpack.c.b16 %v746, %v742
    %v1007 = vpack.c.b16 %v747, %v743
    %v1008 = vpack.c.b16 %v748, %v744
    %v1009 = vpack.c.b16 %v749, %v745
    %v1010 = vpack.c.b16 %v754, %v750
    %v1011 = vpack.c.b16 %v755, %v751
    %v1012 = vpack.c.b16 %v756, %v752
    %v1013 = vpack.c.b16 %v757, %v753
    %v1014 = vpack.c.b16 %v762, %v758
    %v1015 = vpack.c.b16 %v763, %v759
    %v1016 = vpack.c.b16 %v764, %v760
    %v1017 = vpack.c.b16 %v765, %v761
    %v1018 = vpack.c.b16 %v770, %v766
    %v1019 = vpack.c.b16 %v771, %v767
    %v1020 = vpack.c.b16 %v772, %v768
    %v1021 = vpack.c.b16 %v773, %v769
    %v1022 = vpack.c.b16 %v778, %v774
    %v1023 = vpack.c.b16 %v779, %v775
    %v1024 = vpack.c.b16 %v780, %v776
    %v1025 = vpack.c.b16 %v781, %v777
    %v1026 = vpack.c.b16 %v786, %v782
    %v1027 = vpack.c.b16 %v787, %v783
    %v1028 = vpack.c.b16 %v788, %v784
    %v1029 = vpack.c.b16 %v789, %v785
    %v1030 = vpack.c.b16 %v794, %v790
    %v1031 = vpack.c.b16 %v795, %v791
    %v1032 = vpack.c.b16 %v796, %v792
    %v1033 = vpack.c.b16 %v797, %v793
    %v1034 = vpack.c.b16 %v802, %v798
    %v1035 = vpack.c.b16 %v803, %v799
    %v1036 = vpack.c.b16 %v804, %v800
    %v1037 = vpack.c.b16 %v805, %v801
    %v1038 = vpack.c.b16 %v810, %v806
    %v1039 = vpack.c.b16 %v811, %v807
    %v1040 = vpack.c.b16 %v812, %v808
    %v1041 = vpack.c.b16 %v813, %v809
    %v1042 = vpack.c.b16 %v818, %v814
    %v1043 = vpack.c.b16 %v819, %v815
    %v1044 = vpack.c.b16 %v820, %v816
    %v1045 = vpack.c.b16 %v821, %v817
    %v1046 = vpack.c.b16 %v826, %v822
    %v1047 = vpack.c.b16 %v827, %v823
    %v1048 = vpack.c.b16 %v828, %v824
    %v1049 = vpack.c.b16 %v829, %v825
    %v1050 = vpack.c.b16 %v834, %v830
    %v1051 = vpack.c.b16 %v835, %v831
    %v1052 = vpack.c.b16 %v836, %v832
    %v1053 = vpack.c.b16 %v837, %v833
    %v1054 = vpack.c.b16 %v842, %v838
    %v1055 = vpack.c.b16 %v843, %v839
    %v1056 = vpack.c.b16 %v844, %v840
    %v1057 = vpack.c.b16 %v845, %v841
    %v1058 = vpack.c.b16 %v850, %v846
    %v1059 = vpack.c.b16 %v851, %v847
    %v1060 = vpack.c.b16 %v852, %v848
    %v1061 = vpack.c.b16 %v853, %v849
    %v1062 = vpack.c.b16 %v858, %v854
    %v1063 = vpack.c.b16 %v859, %v855
    %v1064 = vpack.c.b16 %v860, %v856
    %v1065 = vpack.c.b16 %v861, %v857
    %v1066 = vpack.c.b16 %v866, %v862
    %v1067 = vpack.c.b16 %v867, %v863
    %v1068 = vpack.c.b16 %v868, %v864
    %v1069 = vpack.c.b16 %v869, %v865
    %v1070 = vpack.c.b16 %v874, %v870
    %v1071 = vpack.c.b16 %v875, %v871
    %v1072 = vpack.c.b16 %v876, %v872
    %v1073 = vpack.c.b16 %v877, %v873
    %v1074 = vpack.c.b16 %v882, %v878
    %v1075 = vpack.c.b16 %v883, %v879
    %v1076 = vpack.c.b16 %v884, %v880
    %v1077 = vpack.c.b16 %v885, %v881
    %1270 = vmatpush.bf16.msra.mxu0 %v914
    %1271 = vmatpush.bf16.msra.mxu0 %v910
    %1272 = vmatpush.bf16.msra.mxu0 %v906
    %1273 = vmatpush.bf16.msra.mxu0 %v902
    %1274 = vmatpush.bf16.msra.mxu0 %v898
    %1275 = vmatpush.bf16.msra.mxu0 %v894
    %1276 = vmatpush.bf16.msra.mxu0 %v890
    %1277 = vmatpush.bf16.msra.mxu0 %v886
    %1278 = vmatmul.bf16.gmra.mxu0 %v298
    %v1279 = vpop.f32.mrf.mxu0
    %v1280 = vadd.f32 %v288, %v1279
    %v1281 = vpop.f32.mrf.mxu0
    %1282 = vdwg.mxu0
    %1283 = vmatpush.bf16.msra.mxu0 %v946
    %1284 = vmatpush.bf16.msra.mxu0 %v942
    %1285 = vmatpush.bf16.msra.mxu0 %v938
    %1286 = vmatpush.bf16.msra.mxu0 %v934
    %1287 = vmatpush.bf16.msra.mxu0 %v930
    %1288 = vmatpush.bf16.msra.mxu0 %v926
    %1289 = vmatpush.bf16.msra.mxu0 %v922
    %1290 = vmatpush.bf16.msra.mxu0 %v918
    %1291 = vmatmul.bf16.gmra.mxu0 %v299
    %v1292 = vpop.f32.mrf.mxu0
    %v1293 = vadd.f32 %v1280, %v1292
    %v1294 = vpop.f32.mrf.mxu0
    %1295 = vdwg.mxu0
    %1296 = vmatpush.bf16.msra.mxu0 %v978
    %1297 = vmatpush.bf16.msra.mxu0 %v974
    %1298 = vmatpush.bf16.msra.mxu0 %v970
    %1299 = vmatpush.bf16.msra.mxu0 %v966
    %1300 = vmatpush.bf16.msra.mxu0 %v962
    %1301 = vmatpush.bf16.msra.mxu0 %v958
    %1302 = vmatpush.bf16.msra.mxu0 %v954
    %1303 = vmatpush.bf16.msra.mxu0 %v950
    %1304 = vmatmul.bf16.gmra.mxu0 %v300
    %v1305 = vpop.f32.mrf.mxu0
    %v1306 = vadd.f32 %v1293, %v1305
    %v1307 = vpop.f32.mrf.mxu0
    %1308 = vdwg.mxu0
    %1309 = vmatpush.bf16.msra.mxu0 %v1010
    %1310 = vmatpush.bf16.msra.mxu0 %v1006
    %1311 = vmatpush.bf16.msra.mxu0 %v1002
    %1312 = vmatpush.bf16.msra.mxu0 %v998
    %1313 = vmatpush.bf16.msra.mxu0 %v994
    %1314 = vmatpush.bf16.msra.mxu0 %v990
    %1315 = vmatpush.bf16.msra.mxu0 %v986
    %1316 = vmatpush.bf16.msra.mxu0 %v982
    %1317 = vmatmul.bf16.gmra.mxu0 %v301
    %v1318 = vpop.f32.mrf.mxu0
    %v1319 = vadd.f32 %v1306, %v1318
    %v1320 = vpop.f32.mrf.mxu0
    %1321 = vdwg.mxu0
    %1322 = vmatpush.bf16.msra.mxu0 %v1042
    %1323 = vmatpush.bf16.msra.mxu0 %v1038
    %1324 = vmatpush.bf16.msra.mxu0 %v1034
    %1325 = vmatpush.bf16.msra.mxu0 %v1030
    %1326 = vmatpush.bf16.msra.mxu0 %v1026
    %1327 = vmatpush.bf16.msra.mxu0 %v1022
    %1328 = vmatpush.bf16.msra.mxu0 %v1018
    %1329 = vmatpush.bf16.msra.mxu0 %v1014
    %1330 = vmatmul.bf16.gmra.mxu0 %v302
    %v1331 = vpop.f32.mrf.mxu0
    %v1332 = vadd.f32 %v1319, %v1331
    %v1333 = vpop.f32.mrf.mxu0
    %1334 = vdwg.mxu0
    %1335 = vmatpush.bf16.msra.mxu0 %v1074
    %1336 = vmatpush.bf16.msra.mxu0 %v1070
    %1337 = vmatpush.bf16.msra.mxu0 %v1066
    %1338 = vmatpush.bf16.msra.mxu0 %v1062
    %1339 = vmatpush.bf16.msra.mxu0 %v1058
    %1340 = vmatpush.bf16.msra.mxu0 %v1054
    %1341 = vmatpush.bf16.msra.mxu0 %v1050
    %1342 = vmatpush.bf16.msra.mxu0 %v1046
    %1343 = vmatmul.bf16.gmra.mxu0 %v303
    %v1344 = vpop.f32.mrf.mxu0
    %v1345 = vadd.f32 %v1332, %v1344
    %v1346 = vpop.f32.mrf.mxu0
    %1347 = vdwg.mxu0
    %1348 = vmatpush.bf16.msra.mxu0 %v915
    %1349 = vmatpush.bf16.msra.mxu0 %v911
    %1350 = vmatpush.bf16.msra.mxu0 %v907
    %1351 = vmatpush.bf16.msra.mxu0 %v903
    %1352 = vmatpush.bf16.msra.mxu0 %v899
    %1353 = vmatpush.bf16.msra.mxu0 %v895
    %1354 = vmatpush.bf16.msra.mxu0 %v891
    %1355 = vmatpush.bf16.msra.mxu0 %v887
    %1356 = vmatmul.bf16.gmra.mxu0 %v298
    %v1357 = vpop.f32.mrf.mxu0
    %v1358 = vadd.f32 %v289, %v1357
    %v1359 = vpop.f32.mrf.mxu0
    %1360 = vdwg.mxu0
    %1361 = vmatpush.bf16.msra.mxu0 %v947
    %1362 = vmatpush.bf16.msra.mxu0 %v943
    %1363 = vmatpush.bf16.msra.mxu0 %v939
    %1364 = vmatpush.bf16.msra.mxu0 %v935
    %1365 = vmatpush.bf16.msra.mxu0 %v931
    %1366 = vmatpush.bf16.msra.mxu0 %v927
    %1367 = vmatpush.bf16.msra.mxu0 %v923
    %1368 = vmatpush.bf16.msra.mxu0 %v919
    %1369 = vmatmul.bf16.gmra.mxu0 %v299
    %v1370 = vpop.f32.mrf.mxu0
    %v1371 = vadd.f32 %v1358, %v1370
    %v1372 = vpop.f32.mrf.mxu0
    %1373 = vdwg.mxu0
    %1374 = vmatpush.bf16.msra.mxu0 %v979
    %1375 = vmatpush.bf16.msra.mxu0 %v975
    %1376 = vmatpush.bf16.msra.mxu0 %v971
    %1377 = vmatpush.bf16.msra.mxu0 %v967
    %1378 = vmatpush.bf16.msra.mxu0 %v963
    %1379 = vmatpush.bf16.msra.mxu0 %v959
    %1380 = vmatpush.bf16.msra.mxu0 %v955
    %1381 = vmatpush.bf16.msra.mxu0 %v951
    %1382 = vmatmul.bf16.gmra.mxu0 %v300
    %v1383 = vpop.f32.mrf.mxu0
    %v1384 = vadd.f32 %v1371, %v1383
    %v1385 = vpop.f32.mrf.mxu0
    %1386 = vdwg.mxu0
    %1387 = vmatpush.bf16.msra.mxu0 %v1011
    %1388 = vmatpush.bf16.msra.mxu0 %v1007
    %1389 = vmatpush.bf16.msra.mxu0 %v1003
    %1390 = vmatpush.bf16.msra.mxu0 %v999
    %1391 = vmatpush.bf16.msra.mxu0 %v995
    %1392 = vmatpush.bf16.msra.mxu0 %v991
    %1393 = vmatpush.bf16.msra.mxu0 %v987
    %1394 = vmatpush.bf16.msra.mxu0 %v983
    %1395 = vmatmul.bf16.gmra.mxu0 %v301
    %v1396 = vpop.f32.mrf.mxu0
    %v1397 = vadd.f32 %v1384, %v1396
    %v1398 = vpop.f32.mrf.mxu0
    %1399 = vdwg.mxu0
    %1400 = vmatpush.bf16.msra.mxu0 %v1043
    %1401 = vmatpush.bf16.msra.mxu0 %v1039
    %1402 = vmatpush.bf16.msra.mxu0 %v1035
    %1403 = vmatpush.bf16.msra.mxu0 %v1031
    %1404 = vmatpush.bf16.msra.mxu0 %v1027
    %1405 = vmatpush.bf16.msra.mxu0 %v1023
    %1406 = vmatpush.bf16.msra.mxu0 %v1019
    %1407 = vmatpush.bf16.msra.mxu0 %v1015
    %1408 = vmatmul.bf16.gmra.mxu0 %v302
    %v1409 = vpop.f32.mrf.mxu0
    %v1410 = vadd.f32 %v1397, %v1409
    %v1411 = vpop.f32.mrf.mxu0
    %1412 = vdwg.mxu0
    %1413 = vmatpush.bf16.msra.mxu0 %v1075
    %1414 = vmatpush.bf16.msra.mxu0 %v1071
    %1415 = vmatpush.bf16.msra.mxu0 %v1067
    %1416 = vmatpush.bf16.msra.mxu0 %v1063
    %1417 = vmatpush.bf16.msra.mxu0 %v1059
    %1418 = vmatpush.bf16.msra.mxu0 %v1055
    %1419 = vmatpush.bf16.msra.mxu0 %v1051
    %1420 = vmatpush.bf16.msra.mxu0 %v1047
    %1421 = vmatmul.bf16.gmra.mxu0 %v303
    %v1422 = vpop.f32.mrf.mxu0
    %v1423 = vadd.f32 %v1410, %v1422
    %v1424 = vpop.f32.mrf.mxu0
    %1425 = vdwg.mxu0
    %1426 = vmatpush.bf16.msra.mxu0 %v916
    %1427 = vmatpush.bf16.msra.mxu0 %v912
    %1428 = vmatpush.bf16.msra.mxu0 %v908
    %1429 = vmatpush.bf16.msra.mxu0 %v904
    %1430 = vmatpush.bf16.msra.mxu0 %v900
    %1431 = vmatpush.bf16.msra.mxu0 %v896
    %1432 = vmatpush.bf16.msra.mxu0 %v892
    %1433 = vmatpush.bf16.msra.mxu0 %v888
    %1434 = vmatmul.bf16.gmra.mxu0 %v298
    %v1435 = vpop.f32.mrf.mxu0
    %v1436 = vadd.f32 %v290, %v1435
    %v1437 = vpop.f32.mrf.mxu0
    %1438 = vdwg.mxu0
    %1439 = vmatpush.bf16.msra.mxu0 %v948
    %1440 = vmatpush.bf16.msra.mxu0 %v944
    %1441 = vmatpush.bf16.msra.mxu0 %v940
    %1442 = vmatpush.bf16.msra.mxu0 %v936
    %1443 = vmatpush.bf16.msra.mxu0 %v932
    %1444 = vmatpush.bf16.msra.mxu0 %v928
    %1445 = vmatpush.bf16.msra.mxu0 %v924
    %1446 = vmatpush.bf16.msra.mxu0 %v920
    %1447 = vmatmul.bf16.gmra.mxu0 %v299
    %v1448 = vpop.f32.mrf.mxu0
    %v1449 = vadd.f32 %v1436, %v1448
    %v1450 = vpop.f32.mrf.mxu0
    %1451 = vdwg.mxu0
    %1452 = vmatpush.bf16.msra.mxu0 %v980
    %1453 = vmatpush.bf16.msra.mxu0 %v976
    %1454 = vmatpush.bf16.msra.mxu0 %v972
    %1455 = vmatpush.bf16.msra.mxu0 %v968
    %1456 = vmatpush.bf16.msra.mxu0 %v964
    %1457 = vmatpush.bf16.msra.mxu0 %v960
    %1458 = vmatpush.bf16.msra.mxu0 %v956
    %1459 = vmatpush.bf16.msra.mxu0 %v952
    %1460 = vmatmul.bf16.gmra.mxu0 %v300
    %v1461 = vpop.f32.mrf.mxu0
    %v1462 = vadd.f32 %v1449, %v1461
    %v1463 = vpop.f32.mrf.mxu0
    %1464 = vdwg.mxu0
    %1465 = vmatpush.bf16.msra.mxu0 %v1012
    %1466 = vmatpush.bf16.msra.mxu0 %v1008
    %1467 = vmatpush.bf16.msra.mxu0 %v1004
    %1468 = vmatpush.bf16.msra.mxu0 %v1000
    %1469 = vmatpush.bf16.msra.mxu0 %v996
    %1470 = vmatpush.bf16.msra.mxu0 %v992
    %1471 = vmatpush.bf16.msra.mxu0 %v988
    %1472 = vmatpush.bf16.msra.mxu0 %v984
    %1473 = vmatmul.bf16.gmra.mxu0 %v301
    %v1474 = vpop.f32.mrf.mxu0
    %v1475 = vadd.f32 %v1462, %v1474
    %v1476 = vpop.f32.mrf.mxu0
    %1477 = vdwg.mxu0
    %1478 = vmatpush.bf16.msra.mxu0 %v1044
    %1479 = vmatpush.bf16.msra.mxu0 %v1040
    %1480 = vmatpush.bf16.msra.mxu0 %v1036
    %1481 = vmatpush.bf16.msra.mxu0 %v1032
    %1482 = vmatpush.bf16.msra.mxu0 %v1028
    %1483 = vmatpush.bf16.msra.mxu0 %v1024
    %1484 = vmatpush.bf16.msra.mxu0 %v1020
    %1485 = vmatpush.bf16.msra.mxu0 %v1016
    %1486 = vmatmul.bf16.gmra.mxu0 %v302
    %v1487 = vpop.f32.mrf.mxu0
    %v1488 = vadd.f32 %v1475, %v1487
    %v1489 = vpop.f32.mrf.mxu0
    %1490 = vdwg.mxu0
    %1491 = vmatpush.bf16.msra.mxu0 %v1076
    %1492 = vmatpush.bf16.msra.mxu0 %v1072
    %1493 = vmatpush.bf16.msra.mxu0 %v1068
    %1494 = vmatpush.bf16.msra.mxu0 %v1064
    %1495 = vmatpush.bf16.msra.mxu0 %v1060
    %1496 = vmatpush.bf16.msra.mxu0 %v1056
    %1497 = vmatpush.bf16.msra.mxu0 %v1052
    %1498 = vmatpush.bf16.msra.mxu0 %v1048
    %1499 = vmatmul.bf16.gmra.mxu0 %v303
    %v1500 = vpop.f32.mrf.mxu0
    %v1501 = vadd.f32 %v1488, %v1500
    %v1502 = vpop.f32.mrf.mxu0
    %1503 = vdwg.mxu0
    %1504 = vmatpush.bf16.msra.mxu0 %v917
    %1505 = vmatpush.bf16.msra.mxu0 %v913
    %1506 = vmatpush.bf16.msra.mxu0 %v909
    %1507 = vmatpush.bf16.msra.mxu0 %v905
    %1508 = vmatpush.bf16.msra.mxu0 %v901
    %1509 = vmatpush.bf16.msra.mxu0 %v897
    %1510 = vmatpush.bf16.msra.mxu0 %v893
    %1511 = vmatpush.bf16.msra.mxu0 %v889
    %1512 = vmatmul.bf16.gmra.mxu0 %v298
    %v1513 = vpop.f32.mrf.mxu0
    %v1514 = vadd.f32 %v291, %v1513
    %v1515 = vpop.f32.mrf.mxu0
    %1516 = vdwg.mxu0
    %1517 = vmatpush.bf16.msra.mxu0 %v949
    %1518 = vmatpush.bf16.msra.mxu0 %v945
    %1519 = vmatpush.bf16.msra.mxu0 %v941
    %1520 = vmatpush.bf16.msra.mxu0 %v937
    %1521 = vmatpush.bf16.msra.mxu0 %v933
    %1522 = vmatpush.bf16.msra.mxu0 %v929
    %1523 = vmatpush.bf16.msra.mxu0 %v925
    %1524 = vmatpush.bf16.msra.mxu0 %v921
    %1525 = vmatmul.bf16.gmra.mxu0 %v299
    %v1526 = vpop.f32.mrf.mxu0
    %v1527 = vadd.f32 %v1514, %v1526
    %v1528 = vpop.f32.mrf.mxu0
    %1529 = vdwg.mxu0
    %1530 = vmatpush.bf16.msra.mxu0 %v981
    %1531 = vmatpush.bf16.msra.mxu0 %v977
    %1532 = vmatpush.bf16.msra.mxu0 %v973
    %1533 = vmatpush.bf16.msra.mxu0 %v969
    %1534 = vmatpush.bf16.msra.mxu0 %v965
    %1535 = vmatpush.bf16.msra.mxu0 %v961
    %1536 = vmatpush.bf16.msra.mxu0 %v957
    %1537 = vmatpush.bf16.msra.mxu0 %v953
    %1538 = vmatmul.bf16.gmra.mxu0 %v300
    %v1539 = vpop.f32.mrf.mxu0
    %v1540 = vadd.f32 %v1527, %v1539
    %v1541 = vpop.f32.mrf.mxu0
    %1542 = vdwg.mxu0
    %1543 = vmatpush.bf16.msra.mxu0 %v1013
    %1544 = vmatpush.bf16.msra.mxu0 %v1009
    %1545 = vmatpush.bf16.msra.mxu0 %v1005
    %1546 = vmatpush.bf16.msra.mxu0 %v1001
    %1547 = vmatpush.bf16.msra.mxu0 %v997
    %1548 = vmatpush.bf16.msra.mxu0 %v993
    %1549 = vmatpush.bf16.msra.mxu0 %v989
    %1550 = vmatpush.bf16.msra.mxu0 %v985
    %1551 = vmatmul.bf16.gmra.mxu0 %v301
    %v1552 = vpop.f32.mrf.mxu0
    %v1553 = vadd.f32 %v1540, %v1552
    %v1554 = vpop.f32.mrf.mxu0
    %1555 = vdwg.mxu0
    %1556 = vmatpush.bf16.msra.mxu0 %v1045
    %1557 = vmatpush.bf16.msra.mxu0 %v1041
    %1558 = vmatpush.bf16.msra.mxu0 %v1037
    %1559 = vmatpush.bf16.msra.mxu0 %v1033
    %1560 = vmatpush.bf16.msra.mxu0 %v1029
    %1561 = vmatpush.bf16.msra.mxu0 %v1025
    %1562 = vmatpush.bf16.msra.mxu0 %v1021
    %1563 = vmatpush.bf16.msra.mxu0 %v1017
    %1564 = vmatmul.bf16.gmra.mxu0 %v302
    %v1565 = vpop.f32.mrf.mxu0
    %v1566 = vadd.f32 %v1553, %v1565
    %v1567 = vpop.f32.mrf.mxu0
    %1568 = vdwg.mxu0
    %1569 = vmatpush.bf16.msra.mxu0 %v1077
    %1570 = vmatpush.bf16.msra.mxu0 %v1073
    %1571 = vmatpush.bf16.msra.mxu0 %v1069
    %1572 = vmatpush.bf16.msra.mxu0 %v1065
    %1573 = vmatpush.bf16.msra.mxu0 %v1061
    %1574 = vmatpush.bf16.msra.mxu0 %v1057
    %1575 = vmatpush.bf16.msra.mxu0 %v1053
    %1576 = vmatpush.bf16.msra.mxu0 %v1049
    %1577 = vmatmul.bf16.gmra.mxu0 %v303
    %v1578 = vpop.f32.mrf.mxu0
    %v1579 = vadd.f32 %v1566, %v1578
    %v1580 = vpop.f32.mrf.mxu0
    %1581 = vdwg.mxu0
    %v1582 = vmax.f32 %v1345, 0.0
    %v1583 = vmax.f32 %v1423, 0.0
    %v1584 = vmax.f32 %v1501, 0.0
    %v1585 = vmax.f32 %v1579, 0.0
    %v1586 = vpack.c.bf16 %v1582, %v1582
    %v1587 = vpack.c.bf16 %v1583, %v1583
    %v1588 = vpack.c.bf16 %v1584, %v1584
    %v1589 = vpack.c.bf16 %v1585, %v1585
    %v1590 = vld [vmem:[#allocation8] sm:$0xff]
    %v1591 = vld [vmem:[#allocation8 + $0x8] sm:$0xff]
    %v1592 = vld [vmem:[#allocation8 + $0x10] sm:$0xff]
    %v1593 = vld [vmem:[#allocation8 + $0x18] sm:$0xff]
    %v1594 = vld [vmem:[#allocation8 + $0x20] sm:$0xff]
    %v1595 = vld [vmem:[#allocation8 + $0x28] sm:$0xff]
    %v1596 = vld [vmem:[#allocation8 + $0x30] sm:$0xff]
    %v1597 = vld [vmem:[#allocation8 + $0x38] sm:$0xff]
    %v1598 = vld [vmem:[#allocation8 + $0x40] sm:$0xff]
    %v1599 = vld [vmem:[#allocation8 + $0x48] sm:$0xff]
    %v1600 = vld [vmem:[#allocation8 + $0x50] sm:$0xff]
    %v1601 = vld [vmem:[#allocation8 + $0x58] sm:$0xff]
    %v1602 = vld [vmem:[#allocation8 + $0x60] sm:$0xff]
    %v1603 = vld [vmem:[#allocation8 + $0x68] sm:$0xff]
    %v1604 = vld [vmem:[#allocation8 + $0x70] sm:$0xff]
    %v1605 = vld [vmem:[#allocation8 + $0x78] sm:$0xff]
    %v1606 = vld [vmem:[#allocation8 + $0x80] sm:$0xff]
    %v1607 = vld [vmem:[#allocation8 + $0x88] sm:$0xff]
    %v1608 = vld [vmem:[#allocation8 + $0x90] sm:$0xff]
    %v1609 = vld [vmem:[#allocation8 + $0x98] sm:$0xff]
    %v1610 = vld [vmem:[#allocation8 + $0xa0] sm:$0xff]
    %v1611 = vld [vmem:[#allocation8 + $0xa8] sm:$0xff]
    %v1612 = vld [vmem:[#allocation8 + $0xb0] sm:$0xff]
    %v1613 = vld [vmem:[#allocation8 + $0xb8] sm:$0xff]
    %v1614 = vld [vmem:[#allocation8 + $0xc0] sm:$0xff]
    %v1615 = vld [vmem:[#allocation8 + $0xc8] sm:$0xff]
    %v1616 = vld [vmem:[#allocation8 + $0xd0] sm:$0xff]
    %v1617 = vld [vmem:[#allocation8 + $0xd8] sm:$0xff]
    %v1618 = vld [vmem:[#allocation8 + $0xe0] sm:$0xff]
    %v1619 = vld [vmem:[#allocation8 + $0xe8] sm:$0xff]
    %v1620 = vld [vmem:[#allocation8 + $0xf0] sm:$0xff]
    %v1621 = vld [vmem:[#allocation8 + $0xf8] sm:$0xff]
    %v1622 = vld [vmem:[#allocation8 + $0x100] sm:$0xff]
    %v1623 = vld [vmem:[#allocation8 + $0x108] sm:$0xff]
    %v1624 = vld [vmem:[#allocation8 + $0x110] sm:$0xff]
    %v1625 = vld [vmem:[#allocation8 + $0x118] sm:$0xff]
    %v1626 = vld [vmem:[#allocation8 + $0x120] sm:$0xff]
    %v1627 = vld [vmem:[#allocation8 + $0x128] sm:$0xff]
    %v1628 = vld [vmem:[#allocation8 + $0x130] sm:$0xff]
    %v1629 = vld [vmem:[#allocation8 + $0x138] sm:$0xff]
    %v1630 = vld [vmem:[#allocation8 + $0x140] sm:$0xff]
    %v1631 = vld [vmem:[#allocation8 + $0x148] sm:$0xff]
    %v1632 = vld [vmem:[#allocation8 + $0x150] sm:$0xff]
    %v1633 = vld [vmem:[#allocation8 + $0x158] sm:$0xff]
    %v1634 = vld [vmem:[#allocation8 + $0x160] sm:$0xff]
    %v1635 = vld [vmem:[#allocation8 + $0x168] sm:$0xff]
    %v1636 = vld [vmem:[#allocation8 + $0x170] sm:$0xff]
    %v1637 = vld [vmem:[#allocation8 + $0x178] sm:$0xff]
    %v1638 = vld [vmem:[#allocation8 + $0x180] sm:$0xff]
    %v1639 = vld [vmem:[#allocation8 + $0x188] sm:$0xff]
    %v1640 = vld [vmem:[#allocation8 + $0x190] sm:$0xff]
    %v1641 = vld [vmem:[#allocation8 + $0x198] sm:$0xff]
    %v1642 = vld [vmem:[#allocation8 + $0x1a0] sm:$0xff]
    %v1643 = vld [vmem:[#allocation8 + $0x1a8] sm:$0xff]
    %v1644 = vld [vmem:[#allocation8 + $0x1b0] sm:$0xff]
    %v1645 = vld [vmem:[#allocation8 + $0x1b8] sm:$0xff]
    %v1646 = vld [vmem:[#allocation8 + $0x1c0] sm:$0xff]
    %v1647 = vld [vmem:[#allocation8 + $0x1c8] sm:$0xff]
    %v1648 = vld [vmem:[#allocation8 + $0x1d0] sm:$0xff]
    %v1649 = vld [vmem:[#allocation8 + $0x1d8] sm:$0xff]
    %v1650 = vld [vmem:[#allocation8 + $0x1e0] sm:$0xff]
    %v1651 = vld [vmem:[#allocation8 + $0x1e8] sm:$0xff]
    %v1652 = vld [vmem:[#allocation8 + $0x1f0] sm:$0xff]
    %v1653 = vld [vmem:[#allocation8 + $0x1f8] sm:$0xff]
    %v1654 = vld [vmem:[#allocation8 + $0x200] sm:$0xff]
    %v1655 = vld [vmem:[#allocation8 + $0x208] sm:$0xff]
    %v1656 = vld [vmem:[#allocation8 + $0x210] sm:$0xff]
    %v1657 = vld [vmem:[#allocation8 + $0x218] sm:$0xff]
    %v1658 = vld [vmem:[#allocation8 + $0x220] sm:$0xff]
    %v1659 = vld [vmem:[#allocation8 + $0x228] sm:$0xff]
    %v1660 = vld [vmem:[#allocation8 + $0x230] sm:$0xff]
    %v1661 = vld [vmem:[#allocation8 + $0x238] sm:$0xff]
    %v1662 = vld [vmem:[#allocation8 + $0x240] sm:$0xff]
    %v1663 = vld [vmem:[#allocation8 + $0x248] sm:$0xff]
    %v1664 = vld [vmem:[#allocation8 + $0x250] sm:$0xff]
    %v1665 = vld [vmem:[#allocation8 + $0x258] sm:$0xff]
    %v1666 = vld [vmem:[#allocation8 + $0x260] sm:$0xff]
    %v1667 = vld [vmem:[#allocation8 + $0x268] sm:$0xff]
    %v1668 = vld [vmem:[#allocation8 + $0x270] sm:$0xff]
    %v1669 = vld [vmem:[#allocation8 + $0x278] sm:$0xff]
    %v1670 = vld [vmem:[#allocation8 + $0x280] sm:$0xff]
    %v1671 = vld [vmem:[#allocation8 + $0x288] sm:$0xff]
    %v1672 = vld [vmem:[#allocation8 + $0x290] sm:$0xff]
    %v1673 = vld [vmem:[#allocation8 + $0x298] sm:$0xff]
    %v1674 = vld [vmem:[#allocation8 + $0x2a0] sm:$0xff]
    %v1675 = vld [vmem:[#allocation8 + $0x2a8] sm:$0xff]
    %v1676 = vld [vmem:[#allocation8 + $0x2b0] sm:$0xff]
    %v1677 = vld [vmem:[#allocation8 + $0x2b8] sm:$0xff]
    %v1678 = vld [vmem:[#allocation8 + $0x2c0] sm:$0xff]
    %v1679 = vld [vmem:[#allocation8 + $0x2c8] sm:$0xff]
    %v1680 = vld [vmem:[#allocation8 + $0x2d0] sm:$0xff]
    %v1681 = vld [vmem:[#allocation8 + $0x2d8] sm:$0xff]
    %v1682 = vld [vmem:[#allocation8 + $0x2e0] sm:$0xff]
    %v1683 = vld [vmem:[#allocation8 + $0x2e8] sm:$0xff]
    %v1684 = vld [vmem:[#allocation8 + $0x2f0] sm:$0xff]
    %v1685 = vld [vmem:[#allocation8 + $0x2f8] sm:$0xff]
    %v1686 = vld [vmem:[#allocation8 + $0x300] sm:$0xff]
    %v1687 = vld [vmem:[#allocation8 + $0x308] sm:$0xff]
    %v1688 = vld [vmem:[#allocation8 + $0x310] sm:$0xff]
    %v1689 = vld [vmem:[#allocation8 + $0x318] sm:$0xff]
    %v1690 = vld [vmem:[#allocation8 + $0x320] sm:$0xff]
    %v1691 = vld [vmem:[#allocation8 + $0x328] sm:$0xff]
    %v1692 = vld [vmem:[#allocation8 + $0x330] sm:$0xff]
    %v1693 = vld [vmem:[#allocation8 + $0x338] sm:$0xff]
    %v1694 = vld [vmem:[#allocation8 + $0x340] sm:$0xff]
    %v1695 = vld [vmem:[#allocation8 + $0x348] sm:$0xff]
    %v1696 = vld [vmem:[#allocation8 + $0x350] sm:$0xff]
    %v1697 = vld [vmem:[#allocation8 + $0x358] sm:$0xff]
    %v1698 = vld [vmem:[#allocation8 + $0x360] sm:$0xff]
    %v1699 = vld [vmem:[#allocation8 + $0x368] sm:$0xff]
    %v1700 = vld [vmem:[#allocation8 + $0x370] sm:$0xff]
    %v1701 = vld [vmem:[#allocation8 + $0x378] sm:$0xff]
    %v1702 = vld [vmem:[#allocation8 + $0x380] sm:$0xff]
    %v1703 = vld [vmem:[#allocation8 + $0x388] sm:$0xff]
    %v1704 = vld [vmem:[#allocation8 + $0x390] sm:$0xff]
    %v1705 = vld [vmem:[#allocation8 + $0x398] sm:$0xff]
    %v1706 = vld [vmem:[#allocation8 + $0x3a0] sm:$0xff]
    %v1707 = vld [vmem:[#allocation8 + $0x3a8] sm:$0xff]
    %v1708 = vld [vmem:[#allocation8 + $0x3b0] sm:$0xff]
    %v1709 = vld [vmem:[#allocation8 + $0x3b8] sm:$0xff]
    %v1710 = vld [vmem:[#allocation8 + $0x3c0] sm:$0xff]
    %v1711 = vld [vmem:[#allocation8 + $0x3c8] sm:$0xff]
    %v1712 = vld [vmem:[#allocation8 + $0x3d0] sm:$0xff]
    %v1713 = vld [vmem:[#allocation8 + $0x3d8] sm:$0xff]
    %v1714 = vld [vmem:[#allocation8 + $0x3e0] sm:$0xff]
    %v1715 = vld [vmem:[#allocation8 + $0x3e8] sm:$0xff]
    %v1716 = vld [vmem:[#allocation8 + $0x3f0] sm:$0xff]
    %v1717 = vld [vmem:[#allocation8 + $0x3f8] sm:$0xff]
    %v1718 = vld [vmem:[#allocation10] sm:$0xf]
    %v1720 = vperm.slane %v1718, 0
    %v1721 = vperm.slane %v1718, 1
    %v1722 = vperm.slane %v1718, 2
    %v1723 = vperm.slane %v1718, 3
    %v1856 = vunpack.c.l.b16 %v1590
    %v1857 = vunpack.c.h.b16 %v1590
    %v1858 = vunpack.c.l.b16 %v1591
    %v1859 = vunpack.c.h.b16 %v1591
    %v1860 = vunpack.c.l.b16 %v1592
    %v1861 = vunpack.c.h.b16 %v1592
    %v1862 = vunpack.c.l.b16 %v1593
    %v1863 = vunpack.c.h.b16 %v1593
    %v1864 = vunpack.c.l.b16 %v1594
    %v1865 = vunpack.c.h.b16 %v1594
    %v1866 = vunpack.c.l.b16 %v1595
    %v1867 = vunpack.c.h.b16 %v1595
    %v1868 = vunpack.c.l.b16 %v1596
    %v1869 = vunpack.c.h.b16 %v1596
    %v1870 = vunpack.c.l.b16 %v1597
    %v1871 = vunpack.c.h.b16 %v1597
    %v1872 = vunpack.c.l.b16 %v1598
    %v1873 = vunpack.c.h.b16 %v1598
    %v1874 = vunpack.c.l.b16 %v1599
    %v1875 = vunpack.c.h.b16 %v1599
    %v1876 = vunpack.c.l.b16 %v1600
    %v1877 = vunpack.c.h.b16 %v1600
    %v1878 = vunpack.c.l.b16 %v1601
    %v1879 = vunpack.c.h.b16 %v1601
    %v1880 = vunpack.c.l.b16 %v1602
    %v1881 = vunpack.c.h.b16 %v1602
    %v1882 = vunpack.c.l.b16 %v1603
    %v1883 = vunpack.c.h.b16 %v1603
    %v1884 = vunpack.c.l.b16 %v1604
    %v1885 = vunpack.c.h.b16 %v1604
    %v1886 = vunpack.c.l.b16 %v1605
    %v1887 = vunpack.c.h.b16 %v1605
    %v1888 = vunpack.c.l.b16 %v1606
    %v1889 = vunpack.c.h.b16 %v1606
    %v1890 = vunpack.c.l.b16 %v1607
    %v1891 = vunpack.c.h.b16 %v1607
    %v1892 = vunpack.c.l.b16 %v1608
    %v1893 = vunpack.c.h.b16 %v1608
    %v1894 = vunpack.c.l.b16 %v1609
    %v1895 = vunpack.c.h.b16 %v1609
    %v1896 = vunpack.c.l.b16 %v1610
    %v1897 = vunpack.c.h.b16 %v1610
    %v1898 = vunpack.c.l.b16 %v1611
    %v1899 = vunpack.c.h.b16 %v1611
    %v1900 = vunpack.c.l.b16 %v1612
    %v1901 = vunpack.c.h.b16 %v1612
    %v1902 = vunpack.c.l.b16 %v1613
    %v1903 = vunpack.c.h.b16 %v1613
    %v1904 = vunpack.c.l.b16 %v1614
    %v1905 = vunpack.c.h.b16 %v1614
    %v1906 = vunpack.c.l.b16 %v1615
    %v1907 = vunpack.c.h.b16 %v1615
    %v1908 = vunpack.c.l.b16 %v1616
    %v1909 = vunpack.c.h.b16 %v1616
    %v1910 = vunpack.c.l.b16 %v1617
    %v1911 = vunpack.c.h.b16 %v1617
    %v1912 = vunpack.c.l.b16 %v1618
    %v1913 = vunpack.c.h.b16 %v1618
    %v1914 = vunpack.c.l.b16 %v1619
    %v1915 = vunpack.c.h.b16 %v1619
    %v1916 = vunpack.c.l.b16 %v1620
    %v1917 = vunpack.c.h.b16 %v1620
    %v1918 = vunpack.c.l.b16 %v1621
    %v1919 = vunpack.c.h.b16 %v1621
    %v1920 = vunpack.c.l.b16 %v1622
    %v1921 = vunpack.c.h.b16 %v1622
    %v1922 = vunpack.c.l.b16 %v1623
    %v1923 = vunpack.c.h.b16 %v1623
    %v1924 = vunpack.c.l.b16 %v1624
    %v1925 = vunpack.c.h.b16 %v1624
    %v1926 = vunpack.c.l.b16 %v1625
    %v1927 = vunpack.c.h.b16 %v1625
    %v1928 = vunpack.c.l.b16 %v1626
    %v1929 = vunpack.c.h.b16 %v1626
    %v1930 = vunpack.c.l.b16 %v1627
    %v1931 = vunpack.c.h.b16 %v1627
    %v1932 = vunpack.c.l.b16 %v1628
    %v1933 = vunpack.c.h.b16 %v1628
    %v1934 = vunpack.c.l.b16 %v1629
    %v1935 = vunpack.c.h.b16 %v1629
    %v1936 = vunpack.c.l.b16 %v1630
    %v1937 = vunpack.c.h.b16 %v1630
    %v1938 = vunpack.c.l.b16 %v1631
    %v1939 = vunpack.c.h.b16 %v1631
    %v1940 = vunpack.c.l.b16 %v1632
    %v1941 = vunpack.c.h.b16 %v1632
    %v1942 = vunpack.c.l.b16 %v1633
    %v1943 = vunpack.c.h.b16 %v1633
    %v1944 = vunpack.c.l.b16 %v1634
    %v1945 = vunpack.c.h.b16 %v1634
    %v1946 = vunpack.c.l.b16 %v1635
    %v1947 = vunpack.c.h.b16 %v1635
    %v1948 = vunpack.c.l.b16 %v1636
    %v1949 = vunpack.c.h.b16 %v1636
    %v1950 = vunpack.c.l.b16 %v1637
    %v1951 = vunpack.c.h.b16 %v1637
    %v1952 = vunpack.c.l.b16 %v1638
    %v1953 = vunpack.c.h.b16 %v1638
    %v1954 = vunpack.c.l.b16 %v1639
    %v1955 = vunpack.c.h.b16 %v1639
    %v1956 = vunpack.c.l.b16 %v1640
    %v1957 = vunpack.c.h.b16 %v1640
    %v1958 = vunpack.c.l.b16 %v1641
    %v1959 = vunpack.c.h.b16 %v1641
    %v1960 = vunpack.c.l.b16 %v1642
    %v1961 = vunpack.c.h.b16 %v1642
    %v1962 = vunpack.c.l.b16 %v1643
    %v1963 = vunpack.c.h.b16 %v1643
    %v1964 = vunpack.c.l.b16 %v1644
    %v1965 = vunpack.c.h.b16 %v1644
    %v1966 = vunpack.c.l.b16 %v1645
    %v1967 = vunpack.c.h.b16 %v1645
    %v1968 = vunpack.c.l.b16 %v1646
    %v1969 = vunpack.c.h.b16 %v1646
    %v1970 = vunpack.c.l.b16 %v1647
    %v1971 = vunpack.c.h.b16 %v1647
    %v1972 = vunpack.c.l.b16 %v1648
    %v1973 = vunpack.c.h.b16 %v1648
    %v1974 = vunpack.c.l.b16 %v1649
    %v1975 = vunpack.c.h.b16 %v1649
    %v1976 = vunpack.c.l.b16 %v1650
    %v1977 = vunpack.c.h.b16 %v1650
    %v1978 = vunpack.c.l.b16 %v1651
    %v1979 = vunpack.c.h.b16 %v1651
    %v1980 = vunpack.c.l.b16 %v1652
    %v1981 = vunpack.c.h.b16 %v1652
    %v1982 = vunpack.c.l.b16 %v1653
    %v1983 = vunpack.c.h.b16 %v1653
    %v1984 = vunpack.c.l.b16 %v1654
    %v1985 = vunpack.c.h.b16 %v1654
    %v1986 = vunpack.c.l.b16 %v1655
    %v1987 = vunpack.c.h.b16 %v1655
    %v1988 = vunpack.c.l.b16 %v1656
    %v1989 = vunpack.c.h.b16 %v1656
    %v1990 = vunpack.c.l.b16 %v1657
    %v1991 = vunpack.c.h.b16 %v1657
    %v1992 = vunpack.c.l.b16 %v1658
    %v1993 = vunpack.c.h.b16 %v1658
    %v1994 = vunpack.c.l.b16 %v1659
    %v1995 = vunpack.c.h.b16 %v1659
    %v1996 = vunpack.c.l.b16 %v1660
    %v1997 = vunpack.c.h.b16 %v1660
    %v1998 = vunpack.c.l.b16 %v1661
    %v1999 = vunpack.c.h.b16 %v1661
    %v2000 = vunpack.c.l.b16 %v1662
    %v2001 = vunpack.c.h.b16 %v1662
    %v2002 = vunpack.c.l.b16 %v1663
    %v2003 = vunpack.c.h.b16 %v1663
    %v2004 = vunpack.c.l.b16 %v1664
    %v2005 = vunpack.c.h.b16 %v1664
    %v2006 = vunpack.c.l.b16 %v1665
    %v2007 = vunpack.c.h.b16 %v1665
    %v2008 = vunpack.c.l.b16 %v1666
    %v2009 = vunpack.c.h.b16 %v1666
    %v2010 = vunpack.c.l.b16 %v1667
    %v2011 = vunpack.c.h.b16 %v1667
    %v2012 = vunpack.c.l.b16 %v1668
    %v2013 = vunpack.c.h.b16 %v1668
    %v2014 = vunpack.c.l.b16 %v1669
    %v2015 = vunpack.c.h.b16 %v1669
    %v2016 = vunpack.c.l.b16 %v1670
    %v2017 = vunpack.c.h.b16 %v1670
    %v2018 = vunpack.c.l.b16 %v1671
    %v2019 = vunpack.c.h.b16 %v1671
    %v2020 = vunpack.c.l.b16 %v1672
    %v2021 = vunpack.c.h.b16 %v1672
    %v2022 = vunpack.c.l.b16 %v1673
    %v2023 = vunpack.c.h.b16 %v1673
    %v2024 = vunpack.c.l.b16 %v1674
    %v2025 = vunpack.c.h.b16 %v1674
    %v2026 = vunpack.c.l.b16 %v1675
    %v2027 = vunpack.c.h.b16 %v1675
    %v2028 = vunpack.c.l.b16 %v1676
    %v2029 = vunpack.c.h.b16 %v1676
    %v2030 = vunpack.c.l.b16 %v1677
    %v2031 = vunpack.c.h.b16 %v1677
    %v2032 = vunpack.c.l.b16 %v1678
    %v2033 = vunpack.c.h.b16 %v1678
    %v2034 = vunpack.c.l.b16 %v1679
    %v2035 = vunpack.c.h.b16 %v1679
    %v2036 = vunpack.c.l.b16 %v1680
    %v2037 = vunpack.c.h.b16 %v1680
    %v2038 = vunpack.c.l.b16 %v1681
    %v2039 = vunpack.c.h.b16 %v1681
    %v2040 = vunpack.c.l.b16 %v1682
    %v2041 = vunpack.c.h.b16 %v1682
    %v2042 = vunpack.c.l.b16 %v1683
    %v2043 = vunpack.c.h.b16 %v1683
    %v2044 = vunpack.c.l.b16 %v1684
    %v2045 = vunpack.c.h.b16 %v1684
    %v2046 = vunpack.c.l.b16 %v1685
    %v2047 = vunpack.c.h.b16 %v1685
    %v2048 = vunpack.c.l.b16 %v1686
    %v2049 = vunpack.c.h.b16 %v1686
    %v2050 = vunpack.c.l.b16 %v1687
    %v2051 = vunpack.c.h.b16 %v1687
    %v2052 = vunpack.c.l.b16 %v1688
    %v2053 = vunpack.c.h.b16 %v1688
    %v2054 = vunpack.c.l.b16 %v1689
    %v2055 = vunpack.c.h.b16 %v1689
    %v2056 = vunpack.c.l.b16 %v1690
    %v2057 = vunpack.c.h.b16 %v1690
    %v2058 = vunpack.c.l.b16 %v1691
    %v2059 = vunpack.c.h.b16 %v1691
    %v2060 = vunpack.c.l.b16 %v1692
    %v2061 = vunpack.c.h.b16 %v1692
    %v2062 = vunpack.c.l.b16 %v1693
    %v2063 = vunpack.c.h.b16 %v1693
    %v2064 = vunpack.c.l.b16 %v1694
    %v2065 = vunpack.c.h.b16 %v1694
    %v2066 = vunpack.c.l.b16 %v1695
    %v2067 = vunpack.c.h.b16 %v1695
    %v2068 = vunpack.c.l.b16 %v1696
    %v2069 = vunpack.c.h.b16 %v1696
    %v2070 = vunpack.c.l.b16 %v1697
    %v2071 = vunpack.c.h.b16 %v1697
    %v2072 = vunpack.c.l.b16 %v1698
    %v2073 = vunpack.c.h.b16 %v1698
    %v2074 = vunpack.c.l.b16 %v1699
    %v2075 = vunpack.c.h.b16 %v1699
    %v2076 = vunpack.c.l.b16 %v1700
    %v2077 = vunpack.c.h.b16 %v1700
    %v2078 = vunpack.c.l.b16 %v1701
    %v2079 = vunpack.c.h.b16 %v1701
    %v2080 = vunpack.c.l.b16 %v1702
    %v2081 = vunpack.c.h.b16 %v1702
    %v2082 = vunpack.c.l.b16 %v1703
    %v2083 = vunpack.c.h.b16 %v1703
    %v2084 = vunpack.c.l.b16 %v1704
    %v2085 = vunpack.c.h.b16 %v1704
    %v2086 = vunpack.c.l.b16 %v1705
    %v2087 = vunpack.c.h.b16 %v1705
    %v2088 = vunpack.c.l.b16 %v1706
    %v2089 = vunpack.c.h.b16 %v1706
    %v2090 = vunpack.c.l.b16 %v1707
    %v2091 = vunpack.c.h.b16 %v1707
    %v2092 = vunpack.c.l.b16 %v1708
    %v2093 = vunpack.c.h.b16 %v1708
    %v2094 = vunpack.c.l.b16 %v1709
    %v2095 = vunpack.c.h.b16 %v1709
    %v2096 = vunpack.c.l.b16 %v1710
    %v2097 = vunpack.c.h.b16 %v1710
    %v2098 = vunpack.c.l.b16 %v1711
    %v2099 = vunpack.c.h.b16 %v1711
    %v2100 = vunpack.c.l.b16 %v1712
    %v2101 = vunpack.c.h.b16 %v1712
    %v2102 = vunpack.c.l.b16 %v1713
    %v2103 = vunpack.c.h.b16 %v1713
    %v2104 = vunpack.c.l.b16 %v1714
    %v2105 = vunpack.c.h.b16 %v1714
    %v2106 = vunpack.c.l.b16 %v1715
    %v2107 = vunpack.c.h.b16 %v1715
    %v2108 = vunpack.c.l.b16 %v1716
    %v2109 = vunpack.c.h.b16 %v1716
    %v2110 = vunpack.c.l.b16 %v1717
    %v2111 = vunpack.c.h.b16 %v1717
    %v2112 = vpack.c.b16 %v1860, %v1856
    %v2113 = vpack.c.b16 %v1861, %v1857
    %v2114 = vpack.c.b16 %v1862, %v1858
    %v2115 = vpack.c.b16 %v1863, %v1859
    %v2116 = vpack.c.b16 %v1868, %v1864
    %v2117 = vpack.c.b16 %v1869, %v1865
    %v2118 = vpack.c.b16 %v1870, %v1866
    %v2119 = vpack.c.b16 %v1871, %v1867
    %v2120 = vpack.c.b16 %v1876, %v1872
    %v2121 = vpack.c.b16 %v1877, %v1873
    %v2122 = vpack.c.b16 %v1878, %v1874
    %v2123 = vpack.c.b16 %v1879, %v1875
    %v2124 = vpack.c.b16 %v1884, %v1880
    %v2125 = vpack.c.b16 %v1885, %v1881
    %v2126 = vpack.c.b16 %v1886, %v1882
    %v2127 = vpack.c.b16 %v1887, %v1883
    %v2128 = vpack.c.b16 %v1892, %v1888
    %v2129 = vpack.c.b16 %v1893, %v1889
    %v2130 = vpack.c.b16 %v1894, %v1890
    %v2131 = vpack.c.b16 %v1895, %v1891
    %v2132 = vpack.c.b16 %v1900, %v1896
    %v2133 = vpack.c.b16 %v1901, %v1897
    %v2134 = vpack.c.b16 %v1902, %v1898
    %v2135 = vpack.c.b16 %v1903, %v1899
    %v2136 = vpack.c.b16 %v1908, %v1904
    %v2137 = vpack.c.b16 %v1909, %v1905
    %v2138 = vpack.c.b16 %v1910, %v1906
    %v2139 = vpack.c.b16 %v1911, %v1907
    %v2140 = vpack.c.b16 %v1916, %v1912
    %v2141 = vpack.c.b16 %v1917, %v1913
    %v2142 = vpack.c.b16 %v1918, %v1914
    %v2143 = vpack.c.b16 %v1919, %v1915
    %v2144 = vpack.c.b16 %v1924, %v1920
    %v2145 = vpack.c.b16 %v1925, %v1921
    %v2146 = vpack.c.b16 %v1926, %v1922
    %v2147 = vpack.c.b16 %v1927, %v1923
    %v2148 = vpack.c.b16 %v1932, %v1928
    %v2149 = vpack.c.b16 %v1933, %v1929
    %v2150 = vpack.c.b16 %v1934, %v1930
    %v2151 = vpack.c.b16 %v1935, %v1931
    %v2152 = vpack.c.b16 %v1940, %v1936
    %v2153 = vpack.c.b16 %v1941, %v1937
    %v2154 = vpack.c.b16 %v1942, %v1938
    %v2155 = vpack.c.b16 %v1943, %v1939
    %v2156 = vpack.c.b16 %v1948, %v1944
    %v2157 = vpack.c.b16 %v1949, %v1945
    %v2158 = vpack.c.b16 %v1950, %v1946
    %v2159 = vpack.c.b16 %v1951, %v1947
    %v2160 = vpack.c.b16 %v1956, %v1952
    %v2161 = vpack.c.b16 %v1957, %v1953
    %v2162 = vpack.c.b16 %v1958, %v1954
    %v2163 = vpack.c.b16 %v1959, %v1955
    %v2164 = vpack.c.b16 %v1964, %v1960
    %v2165 = vpack.c.b16 %v1965, %v1961
    %v2166 = vpack.c.b16 %v1966, %v1962
    %v2167 = vpack.c.b16 %v1967, %v1963
    %v2168 = vpack.c.b16 %v1972, %v1968
    %v2169 = vpack.c.b16 %v1973, %v1969
    %v2170 = vpack.c.b16 %v1974, %v1970
    %v2171 = vpack.c.b16 %v1975, %v1971
    %v2172 = vpack.c.b16 %v1980, %v1976
    %v2173 = vpack.c.b16 %v1981, %v1977
    %v2174 = vpack.c.b16 %v1982, %v1978
    %v2175 = vpack.c.b16 %v1983, %v1979
    %v2176 = vpack.c.b16 %v1988, %v1984
    %v2177 = vpack.c.b16 %v1989, %v1985
    %v2178 = vpack.c.b16 %v1990, %v1986
    %v2179 = vpack.c.b16 %v1991, %v1987
    %v2180 = vpack.c.b16 %v1996, %v1992
    %v2181 = vpack.c.b16 %v1997, %v1993
    %v2182 = vpack.c.b16 %v1998, %v1994
    %v2183 = vpack.c.b16 %v1999, %v1995
    %v2184 = vpack.c.b16 %v2004, %v2000
    %v2185 = vpack.c.b16 %v2005, %v2001
    %v2186 = vpack.c.b16 %v2006, %v2002
    %v2187 = vpack.c.b16 %v2007, %v2003
    %v2188 = vpack.c.b16 %v2012, %v2008
    %v2189 = vpack.c.b16 %v2013, %v2009
    %v2190 = vpack.c.b16 %v2014, %v2010
    %v2191 = vpack.c.b16 %v2015, %v2011
    %v2192 = vpack.c.b16 %v2020, %v2016
    %v2193 = vpack.c.b16 %v2021, %v2017
    %v2194 = vpack.c.b16 %v2022, %v2018
    %v2195 = vpack.c.b16 %v2023, %v2019
    %v2196 = vpack.c.b16 %v2028, %v2024
    %v2197 = vpack.c.b16 %v2029, %v2025
    %v2198 = vpack.c.b16 %v2030, %v2026
    %v2199 = vpack.c.b16 %v2031, %v2027
    %v2200 = vpack.c.b16 %v2036, %v2032
    %v2201 = vpack.c.b16 %v2037, %v2033
    %v2202 = vpack.c.b16 %v2038, %v2034
    %v2203 = vpack.c.b16 %v2039, %v2035
    %v2204 = vpack.c.b16 %v2044, %v2040
    %v2205 = vpack.c.b16 %v2045, %v2041
    %v2206 = vpack.c.b16 %v2046, %v2042
    %v2207 = vpack.c.b16 %v2047, %v2043
    %v2208 = vpack.c.b16 %v2052, %v2048
    %v2209 = vpack.c.b16 %v2053, %v2049
    %v2210 = vpack.c.b16 %v2054, %v2050
    %v2211 = vpack.c.b16 %v2055, %v2051
    %v2212 = vpack.c.b16 %v2060, %v2056
    %v2213 = vpack.c.b16 %v2061, %v2057
    %v2214 = vpack.c.b16 %v2062, %v2058
    %v2215 = vpack.c.b16 %v2063, %v2059
    %v2216 = vpack.c.b16 %v2068, %v2064
    %v2217 = vpack.c.b16 %v2069, %v2065
    %v2218 = vpack.c.b16 %v2070, %v2066
    %v2219 = vpack.c.b16 %v2071, %v2067
    %v2220 = vpack.c.b16 %v2076, %v2072
    %v2221 = vpack.c.b16 %v2077, %v2073
    %v2222 = vpack.c.b16 %v2078, %v2074
    %v2223 = vpack.c.b16 %v2079, %v2075
    %v2224 = vpack.c.b16 %v2084, %v2080
    %v2225 = vpack.c.b16 %v2085, %v2081
    %v2226 = vpack.c.b16 %v2086, %v2082
    %v2227 = vpack.c.b16 %v2087, %v2083
    %v2228 = vpack.c.b16 %v2092, %v2088
    %v2229 = vpack.c.b16 %v2093, %v2089
    %v2230 = vpack.c.b16 %v2094, %v2090
    %v2231 = vpack.c.b16 %v2095, %v2091
    %v2232 = vpack.c.b16 %v2100, %v2096
    %v2233 = vpack.c.b16 %v2101, %v2097
    %v2234 = vpack.c.b16 %v2102, %v2098
    %v2235 = vpack.c.b16 %v2103, %v2099
    %v2236 = vpack.c.b16 %v2108, %v2104
    %v2237 = vpack.c.b16 %v2109, %v2105
    %v2238 = vpack.c.b16 %v2110, %v2106
    %v2239 = vpack.c.b16 %v2111, %v2107
    %2368 = vmatpush.bf16.msra.mxu0 %v2140
    %2369 = vmatpush.bf16.msra.mxu0 %v2136
    %2370 = vmatpush.bf16.msra.mxu0 %v2132
    %2371 = vmatpush.bf16.msra.mxu0 %v2128
    %2372 = vmatpush.bf16.msra.mxu0 %v2124
    %2373 = vmatpush.bf16.msra.mxu0 %v2120
    %2374 = vmatpush.bf16.msra.mxu0 %v2116
    %2375 = vmatpush.bf16.msra.mxu0 %v2112
    %2376 = vmatmul.bf16.gmra.mxu0 %v1586
    %v2377 = vpop.f32.mrf.mxu0
    %v2378 = vadd.f32 %v1720, %v2377
    %v2379 = vpop.f32.mrf.mxu0
    %2380 = vdwg.mxu0
    %2381 = vmatpush.bf16.msra.mxu0 %v2172
    %2382 = vmatpush.bf16.msra.mxu0 %v2168
    %2383 = vmatpush.bf16.msra.mxu0 %v2164
    %2384 = vmatpush.bf16.msra.mxu0 %v2160
    %2385 = vmatpush.bf16.msra.mxu0 %v2156
    %2386 = vmatpush.bf16.msra.mxu0 %v2152
    %2387 = vmatpush.bf16.msra.mxu0 %v2148
    %2388 = vmatpush.bf16.msra.mxu0 %v2144
    %2389 = vmatmul.bf16.gmra.mxu0 %v1587
    %v2390 = vpop.f32.mrf.mxu0
    %v2391 = vadd.f32 %v2378, %v2390
    %v2392 = vpop.f32.mrf.mxu0
    %2393 = vdwg.mxu0
    %2394 = vmatpush.bf16.msra.mxu0 %v2204
    %2395 = vmatpush.bf16.msra.mxu0 %v2200
    %2396 = vmatpush.bf16.msra.mxu0 %v2196
    %2397 = vmatpush.bf16.msra.mxu0 %v2192
    %2398 = vmatpush.bf16.msra.mxu0 %v2188
    %2399 = vmatpush.bf16.msra.mxu0 %v2184
    %2400 = vmatpush.bf16.msra.mxu0 %v2180
    %2401 = vmatpush.bf16.msra.mxu0 %v2176
    %2402 = vmatmul.bf16.gmra.mxu0 %v1588
    %v2403 = vpop.f32.mrf.mxu0
    %v2404 = vadd.f32 %v2391, %v2403
    %v2405 = vpop.f32.mrf.mxu0
    %2406 = vdwg.mxu0
    %2407 = vmatpush.bf16.msra.mxu0 %v2236
    %2408 = vmatpush.bf16.msra.mxu0 %v2232
    %2409 = vmatpush.bf16.msra.mxu0 %v2228
    %2410 = vmatpush.bf16.msra.mxu0 %v2224
    %2411 = vmatpush.bf16.msra.mxu0 %v2220
    %2412 = vmatpush.bf16.msra.mxu0 %v2216
    %2413 = vmatpush.bf16.msra.mxu0 %v2212
    %2414 = vmatpush.bf16.msra.mxu0 %v2208
    %2415 = vmatmul.bf16.gmra.mxu0 %v1589
    %v2416 = vpop.f32.mrf.mxu0
    %v2417 = vadd.f32 %v2404, %v2416
    %v2418 = vpop.f32.mrf.mxu0
    %2419 = vdwg.mxu0
    %2420 = vmatpush.bf16.msra.mxu0 %v2141
    %2421 = vmatpush.bf16.msra.mxu0 %v2137
    %2422 = vmatpush.bf16.msra.mxu0 %v2133
    %2423 = vmatpush.bf16.msra.mxu0 %v2129
    %2424 = vmatpush.bf16.msra.mxu0 %v2125
    %2425 = vmatpush.bf16.msra.mxu0 %v2121
    %2426 = vmatpush.bf16.msra.mxu0 %v2117
    %2427 = vmatpush.bf16.msra.mxu0 %v2113
    %2428 = vmatmul.bf16.gmra.mxu0 %v1586
    %v2429 = vpop.f32.mrf.mxu0
    %v2430 = vadd.f32 %v1721, %v2429
    %v2431 = vpop.f32.mrf.mxu0
    %2432 = vdwg.mxu0
    %2433 = vmatpush.bf16.msra.mxu0 %v2173
    %2434 = vmatpush.bf16.msra.mxu0 %v2169
    %2435 = vmatpush.bf16.msra.mxu0 %v2165
    %2436 = vmatpush.bf16.msra.mxu0 %v2161
    %2437 = vmatpush.bf16.msra.mxu0 %v2157
    %2438 = vmatpush.bf16.msra.mxu0 %v2153
    %2439 = vmatpush.bf16.msra.mxu0 %v2149
    %2440 = vmatpush.bf16.msra.mxu0 %v2145
    %2441 = vmatmul.bf16.gmra.mxu0 %v1587
    %v2442 = vpop.f32.mrf.mxu0
    %v2443 = vadd.f32 %v2430, %v2442
    %v2444 = vpop.f32.mrf.mxu0
    %2445 = vdwg.mxu0
    %2446 = vmatpush.bf16.msra.mxu0 %v2205
    %2447 = vmatpush.bf16.msra.mxu0 %v2201
    %2448 = vmatpush.bf16.msra.mxu0 %v2197
    %2449 = vmatpush.bf16.msra.mxu0 %v2193
    %2450 = vmatpush.bf16.msra.mxu0 %v2189
    %2451 = vmatpush.bf16.msra.mxu0 %v2185
    %2452 = vmatpush.bf16.msra.mxu0 %v2181
    %2453 = vmatpush.bf16.msra.mxu0 %v2177
    %2454 = vmatmul.bf16.gmra.mxu0 %v1588
    %v2455 = vpop.f32.mrf.mxu0
    %v2456 = vadd.f32 %v2443, %v2455
    %v2457 = vpop.f32.mrf.mxu0
    %2458 = vdwg.mxu0
    %2459 = vmatpush.bf16.msra.mxu0 %v2237
    %2460 = vmatpush.bf16.msra.mxu0 %v2233
    %2461 = vmatpush.bf16.msra.mxu0 %v2229
    %2462 = vmatpush.bf16.msra.mxu0 %v2225
    %2463 = vmatpush.bf16.msra.mxu0 %v2221
    %2464 = vmatpush.bf16.msra.mxu0 %v2217
    %2465 = vmatpush.bf16.msra.mxu0 %v2213
    %2466 = vmatpush.bf16.msra.mxu0 %v2209
    %2467 = vmatmul.bf16.gmra.mxu0 %v1589
    %v2468 = vpop.f32.mrf.mxu0
    %v2469 = vadd.f32 %v2456, %v2468
    %v2470 = vpop.f32.mrf.mxu0
    %2471 = vdwg.mxu0
    %2472 = vmatpush.bf16.msra.mxu0 %v2142
    %2473 = vmatpush.bf16.msra.mxu0 %v2138
    %2474 = vmatpush.bf16.msra.mxu0 %v2134
    %2475 = vmatpush.bf16.msra.mxu0 %v2130
    %2476 = vmatpush.bf16.msra.mxu0 %v2126
    %2477 = vmatpush.bf16.msra.mxu0 %v2122
    %2478 = vmatpush.bf16.msra.mxu0 %v2118
    %2479 = vmatpush.bf16.msra.mxu0 %v2114
    %2480 = vmatmul.bf16.gmra.mxu0 %v1586
    %v2481 = vpop.f32.mrf.mxu0
    %v2482 = vadd.f32 %v1722, %v2481
    %v2483 = vpop.f32.mrf.mxu0
    %2484 = vdwg.mxu0
    %2485 = vmatpush.bf16.msra.mxu0 %v2174
    %2486 = vmatpush.bf16.msra.mxu0 %v2170
    %2487 = vmatpush.bf16.msra.mxu0 %v2166
    %2488 = vmatpush.bf16.msra.mxu0 %v2162
    %2489 = vmatpush.bf16.msra.mxu0 %v2158
    %2490 = vmatpush.bf16.msra.mxu0 %v2154
    %2491 = vmatpush.bf16.msra.mxu0 %v2150
    %2492 = vmatpush.bf16.msra.mxu0 %v2146
    %2493 = vmatmul.bf16.gmra.mxu0 %v1587
    %v2494 = vpop.f32.mrf.mxu0
    %v2495 = vadd.f32 %v2482, %v2494
    %v2496 = vpop.f32.mrf.mxu0
    %2497 = vdwg.mxu0
    %2498 = vmatpush.bf16.msra.mxu0 %v2206
    %2499 = vmatpush.bf16.msra.mxu0 %v2202
    %2500 = vmatpush.bf16.msra.mxu0 %v2198
    %2501 = vmatpush.bf16.msra.mxu0 %v2194
    %2502 = vmatpush.bf16.msra.mxu0 %v2190
    %2503 = vmatpush.bf16.msra.mxu0 %v2186
    %2504 = vmatpush.bf16.msra.mxu0 %v2182
    %2505 = vmatpush.bf16.msra.mxu0 %v2178
    %2506 = vmatmul.bf16.gmra.mxu0 %v1588
    %v2507 = vpop.f32.mrf.mxu0
    %v2508 = vadd.f32 %v2495, %v2507
    %v2509 = vpop.f32.mrf.mxu0
    %2510 = vdwg.mxu0
    %2511 = vmatpush.bf16.msra.mxu0 %v2238
    %2512 = vmatpush.bf16.msra.mxu0 %v2234
    %2513 = vmatpush.bf16.msra.mxu0 %v2230
    %2514 = vmatpush.bf16.msra.mxu0 %v2226
    %2515 = vmatpush.bf16.msra.mxu0 %v2222
    %2516 = vmatpush.bf16.msra.mxu0 %v2218
    %2517 = vmatpush.bf16.msra.mxu0 %v2214
    %2518 = vmatpush.bf16.msra.mxu0 %v2210
    %2519 = vmatmul.bf16.gmra.mxu0 %v1589
    %v2520 = vpop.f32.mrf.mxu0
    %v2521 = vadd.f32 %v2508, %v2520
    %v2522 = vpop.f32.mrf.mxu0
    %2523 = vdwg.mxu0
    %2524 = vmatpush.bf16.msra.mxu0 %v2143
    %2525 = vmatpush.bf16.msra.mxu0 %v2139
    %2526 = vmatpush.bf16.msra.mxu0 %v2135
    %2527 = vmatpush.bf16.msra.mxu0 %v2131
    %2528 = vmatpush.bf16.msra.mxu0 %v2127
    %2529 = vmatpush.bf16.msra.mxu0 %v2123
    %2530 = vmatpush.bf16.msra.mxu0 %v2119
    %2531 = vmatpush.bf16.msra.mxu0 %v2115
    %2532 = vmatmul.bf16.gmra.mxu0 %v1586
    %v2533 = vpop.f32.mrf.mxu0
    %v2534 = vadd.f32 %v1723, %v2533
    %v2535 = vpop.f32.mrf.mxu0
    %2536 = vdwg.mxu0
    %2537 = vmatpush.bf16.msra.mxu0 %v2175
    %2538 = vmatpush.bf16.msra.mxu0 %v2171
    %2539 = vmatpush.bf16.msra.mxu0 %v2167
    %2540 = vmatpush.bf16.msra.mxu0 %v2163
    %2541 = vmatpush.bf16.msra.mxu0 %v2159
    %2542 = vmatpush.bf16.msra.mxu0 %v2155
    %2543 = vmatpush.bf16.msra.mxu0 %v2151
    %2544 = vmatpush.bf16.msra.mxu0 %v2147
    %2545 = vmatmul.bf16.gmra.mxu0 %v1587
    %v2546 = vpop.f32.mrf.mxu0
    %v2547 = vadd.f32 %v2534, %v2546
    %v2548 = vpop.f32.mrf.mxu0
    %2549 = vdwg.mxu0
    %2550 = vmatpush.bf16.msra.mxu0 %v2207
    %2551 = vmatpush.bf16.msra.mxu0 %v2203
    %2552 = vmatpush.bf16.msra.mxu0 %v2199
    %2553 = vmatpush.bf16.msra.mxu0 %v2195
    %2554 = vmatpush.bf16.msra.mxu0 %v2191
    %2555 = vmatpush.bf16.msra.mxu0 %v2187
    %2556 = vmatpush.bf16.msra.mxu0 %v2183
    %2557 = vmatpush.bf16.msra.mxu0 %v2179
    %2558 = vmatmul.bf16.gmra.mxu0 %v1588
    %v2559 = vpop.f32.mrf.mxu0
    %v2560 = vadd.f32 %v2547, %v2559
    %v2561 = vpop.f32.mrf.mxu0
    %2562 = vdwg.mxu0
    %2563 = vmatpush.bf16.msra.mxu0 %v2239
    %2564 = vmatpush.bf16.msra.mxu0 %v2235
    %2565 = vmatpush.bf16.msra.mxu0 %v2231
    %2566 = vmatpush.bf16.msra.mxu0 %v2227
    %2567 = vmatpush.bf16.msra.mxu0 %v2223
    %2568 = vmatpush.bf16.msra.mxu0 %v2219
    %2569 = vmatpush.bf16.msra.mxu0 %v2215
    %2570 = vmatpush.bf16.msra.mxu0 %v2211
    %2571 = vmatmul.bf16.gmra.mxu0 %v1589
    %v2572 = vpop.f32.mrf.mxu0
    %v2573 = vadd.f32 %v2560, %v2572
    %v2574 = vpop.f32.mrf.mxu0
    %2575 = vdwg.mxu0
    %v2580 = vrot.slane %v2469, 6
    %v2581 = vrot.slane %v2521, 4
    %v2582 = vrot.slane %v2573, 2
    %vm2583 = vcmask 1041408
    %v2584 = vsel %vm2583, %v2417, %v2580
    %vm2585 = vcmask 1045508
    %v2586 = vsel %vm2585, %v2581, %v2582
    %vm2587 = vcmask 1043456
    %v2588 = vsel %vm2587, %v2584, %v2586
    %2590 = vst [vmem:[#allocation11] sm:$0xff] %v2588
    // Predicated region
    $region42: #{tpu_custom_call.1} parent=1 // pred_check
      _
    $region43: #{tpu_custom_call.1} parent=1 // pred_check_branch
      %2592 = sbr.rel (0) target = $region45
    $region44: #{tpu_custom_call.1} parent=1 // pred_region
      %2594 = vsyncadd [#allocation4], 0
      %s2596 = sshll.u32 [#allocation11], 4
      %s2597 = int_to_ptr.vmem [resolvable:$true] %s2596
      %s2598 = sshll.u32 %s5, 4
      %s2599 = int_to_ptr.hbm [resolvable:$true] %s2598
      %2601 = dma.vmem_to_hbm [thread:$0]  %s2597, 128, %s2599, [#allocation4]
    $region45: #{tpu_custom_call.1} parent=1 // pred_fallthru
      _
    // Predicated region
    $region46: #{tpu_custom_call.1} parent=1 // pred_check
      _
    $region47: #{tpu_custom_call.1} parent=1 // pred_check_branch
      %2603 = sbr.rel (0) target = $region49
    $region48: #{tpu_custom_call.1} parent=1 // pred_region
      %2605 = dma.done [#allocation4], 128
    $region49: #{tpu_custom_call.1} parent=1 // pred_fallthru
      _
    %2606 = vsyncpa [#allocation3], 1
    %2607 = vsyncpa [#allocation6], 1
    %2608 = vsyncpa [#allocation9], 1
    %2609 = vsyncpa [#allocation4], 1

</llo_original>
